<compile_context>
chip_gen: v6e
topology: v6e:2x2x1
jax: 0.10.0
libtpu: 0.0.40
codegen_flags: <defaults>
</compile_context>

<pallas_src>
import jax
import jax.numpy as jnp
from jax.experimental import pallas as pl
from jax.experimental.pallas import tpu as pltpu

EPS = 1e-5
NEG_SLOPE = 0.2
HIDDEN = 512
N_CLASSES = 10
OUT_PAD = 128  # lane-dense padded output width (keeps w_all last dim % 128 == 0)
W_ALL_COLS = 2 * HIDDEN + OUT_PAD  # 1152


def _bn_lrelu(y, gamma, beta):
    # BatchNorm1d (training mode: batch mean / biased var) + LeakyReLU(0.2), f32.
    mean = jnp.mean(y, axis=0, keepdims=True)
    var = jnp.mean((y - mean) ** 2, axis=0, keepdims=True)
    y = (y - mean) * jax.lax.rsqrt(var + EPS) * gamma + beta
    return jnp.where(y >= 0.0, y, NEG_SLOPE * y)


def label_predictor_kernel(
    h_ref,   # (B, 512)     f32  activations
    w_ref,   # (512, 1152)  bf16 [w1 | w2 | w3_pad]
    v_ref,   # (5, 512)     f32  rows [g1, be1, g2, be2, b3_pad]
    o_ref,   # (B, 128)     f32  padded logits
):
    # Layer 1: Linear (bias cancelled by training-mode BN) + BN + LeakyReLU.
    h = h_ref[...].astype(jnp.bfloat16)                      # in-kernel cast (free)
    y = jnp.dot(h, w_ref[:, 0:HIDDEN],
                preferred_element_type=jnp.float32)
    y = _bn_lrelu(y, v_ref[0:1, :], v_ref[1:2, :])

    # Layer 2: Linear (bias cancelled) + BN + LeakyReLU.
    y = jnp.dot(y.astype(jnp.bfloat16), w_ref[:, HIDDEN:2 * HIDDEN],
                preferred_element_type=jnp.float32)
    y = _bn_lrelu(y, v_ref[2:3, :], v_ref[3:4, :])

    # Layer 3: Linear(512,10), zero-padded to 128 lanes for a dense store.
    o_ref[...] = (
        jnp.dot(y.astype(jnp.bfloat16), w_ref[:, 2 * HIDDEN:W_ALL_COLS],
                preferred_element_type=jnp.float32)
        + v_ref[4:5, 0:OUT_PAD]
    )


def _full_spec(shape):
    # Whole-array block; grid=() so the index_map takes no grid args.
    ndim = len(shape)
    return pl.BlockSpec(shape, lambda *_, _n=ndim: (0,) * _n)


def prepare_params(params):
    """One-time packing of raw f32 params into the kernel's cached form.

    Do this ONCE (outside the hot path) and reuse the result for every call:
      w_all : (512, 1152) bf16  = concat(w1, w2, w3 zero-padded to 128 cols)
      v_all : (5, 512)    f32   = rows [g1, be1, g2, be2, b3 zero-padded to 512]
    b1/b2 are intentionally omitted: training-mode BN cancels them exactly.
    """
    w3_pad = (
        jnp.zeros((HIDDEN, OUT_PAD), jnp.float32)
        .at[:, :N_CLASSES]
        .set(params["w3"])
    )
    w_all = jnp.concatenate(
        [params["w1"], params["w2"], w3_pad], axis=1
    ).astype(jnp.bfloat16)

    b3_pad = (
        jnp.zeros((1, HIDDEN), jnp.float32)
        .at[:, :N_CLASSES]
        .set(params["b3"])
    )
    v_all = jnp.concatenate(
        [params["g1"], params["be1"], params["g2"], params["be2"], b3_pad],
        axis=0,
    ).astype(jnp.float32)
    return {"w_all": w_all, "v_all": v_all}


def label_predictor(h, packed):
    """h: (B, 512) float32. packed: output of prepare_params (cached)."""
    B = h.shape[0]
    args = (h, packed["w_all"], packed["v_all"])
    # Tiny workload (B<=8, F=512): single grid point, everything VMEM-resident.
    out = pl.pallas_call(
        label_predictor_kernel,
        out_shape=jax.ShapeDtypeStruct((B, OUT_PAD), jnp.float32),
        grid=(),
        in_specs=[_full_spec(a.shape) for a in args],
        out_specs=_full_spec((B, OUT_PAD)),
        compiler_params=pltpu.CompilerParams(vmem_limit_bytes=8 << 20),
    )(*args)
    return out[:, :N_CLASSES]


def init_params(key):
    """Deterministic synthetic parameters matching nn.Linear / nn.BatchNorm1d.

    Linear weights stored transposed: (in_features, out_features).
    Biases / gamma / beta stored as (1, F) rows for lane broadcasting.
    b1/b2 are kept here (and used in the reference) to demonstrate that the
    kernel's bias-drop under training-mode BN is numerically exact.
    """
    ks = jax.random.split(key, 8)
    p = {
        "w1": jax.random.normal(ks[0], (HIDDEN, HIDDEN), jnp.float32) * 0.02,
        "b1": jax.random.normal(ks[1], (1, HIDDEN), jnp.float32) * 0.02,
        "g1": 1.0 + jax.random.normal(ks[2], (1, HIDDEN), jnp.float32) * 0.1,
        "be1": jax.random.normal(ks[3], (1, HIDDEN), jnp.float32) * 0.1,
        "w2": jax.random.normal(ks[4], (HIDDEN, HIDDEN), jnp.float32) * 0.02,
        "b2": jax.random.normal(ks[5], (1, HIDDEN), jnp.float32) * 0.02,
        "g2": 1.0 + jax.random.normal(ks[6], (1, HIDDEN), jnp.float32) * 0.1,
        "be2": jax.random.normal(ks[7], (1, HIDDEN), jnp.float32) * 0.1,
    }
    k3 = jax.random.split(ks[0], 2)
    p["w3"] = jax.random.normal(k3[0], (HIDDEN, N_CLASSES), jnp.float32) * 0.02
    p["b3"] = jax.random.normal(k3[1], (1, N_CLASSES), jnp.float32) * 0.02
    return p


def reference(h, p):
    """Pure-JAX reference of the same forward (bf16 dot operands, f32 accum),
    INCLUDING the b1/b2 biases of the original module (they cancel in BN)."""

    def bn_lrelu(y, g, b):
        m = jnp.mean(y, axis=0, keepdims=True)
        v = jnp.mean((y - m) ** 2, axis=0, keepdims=True)
        y = (y - m) / jnp.sqrt(v + EPS) * g + b
        return jnp.where(y >= 0.0, y, NEG_SLOPE * y)

    def dot_bf16(a, w):
        return jnp.dot(a.astype(jnp.bfloat16), w.astype(jnp.bfloat16),
                       preferred_element_type=jnp.float32)

    y = bn_lrelu(dot_bf16(h, p["w1"]) + p["b1"], p["g1"], p["be1"])
    y = bn_lrelu(dot_bf16(y, p["w2"]) + p["b2"], p["g2"], p["be2"])
    return dot_bf16(y, p["w3"]) + p["b3"]


if __name__ == "__main__":
    key = jax.random.PRNGKey(0)
    k_h, k_p = jax.random.split(key)

    B = 8  # small batch (>1 required for BatchNorm1d training-mode stats)
    h = jax.random.normal(k_h, (B, HIDDEN), jnp.float32)
    params = init_params(k_p)

    # One-time param packing (cached outside the hot path).
    packed = jax.tree_util.tree_map(jax.block_until_ready, prepare_params(params))

    out = label_predictor(h, packed)
    out = jax.block_until_ready(out)

    ref = reference(h, params)
    assert out.shape == (B, N_CLASSES)
    assert jnp.allclose(out, ref, atol=5e-3, rtol=5e-3), (
        f"max abs diff {jnp.max(jnp.abs(out - ref))}"
    )
    print("KERNEL_OK")
</pallas_src>

<mosaic_0001>
module attributes {stable_mosaic.version = 11 : i64} {
  func.func @label_predictor_kernel(%arg0: memref<8x512xf32, #tpu.memory_space<vmem>>, %arg1: memref<512x1152xbf16, #tpu.memory_space<vmem>>, %arg2: memref<5x512xf32, #tpu.memory_space<vmem>>, %arg3: memref<8x128xf32, #tpu.memory_space<vmem>>) attributes {dimension_semantics = [], scalar_prefetch = 0 : i64, scratch_operands = 0 : i64, tpu.core_type = #tpu.core_type<tc>} {
    %c0 = arith.constant 0 : index
    %c0_0 = arith.constant 0 : index
    %0 = vector.load %arg0[%c0, %c0_0] : memref<8x512xf32, #tpu.memory_space<vmem>>, vector<8x512xf32>
    %1 = arith.truncf %0 : vector<8x512xf32> to vector<8x512xbf16>
    %c0_1 = arith.constant 0 : index
    %c0_2 = arith.constant 0 : index
    %2 = vector.load %arg1[%c0_1, %c0_2] : memref<512x1152xbf16, #tpu.memory_space<vmem>>, vector<512x512xbf16>
    %cst = arith.constant dense<0.000000e+00> : vector<8x512xf32>
    %3 = tpu.matmul %1, %2, %cst {dimension_numbers = #tpu.dot_dimension_numbers<[1], [0], [0], [1], [0, 0, 1, 1], [], []>} : vector<8x512xbf16>, vector<512x512xbf16>, vector<8x512xf32> -> vector<8x512xf32>
    %c0_3 = arith.constant 0 : index
    %c0_4 = arith.constant 0 : index
    %4 = vector.load %arg2[%c0_3, %c0_4] : memref<5x512xf32, #tpu.memory_space<vmem>>, vector<1x512xf32>
    %c1 = arith.constant 1 : index
    %c0_5 = arith.constant 0 : index
    %5 = vector.load %arg2[%c1, %c0_5] : memref<5x512xf32, #tpu.memory_space<vmem>>, vector<1x512xf32>
    %cst_6 = arith.constant dense<0.000000e+00> : vector<512xf32>
    %6 = vector.multi_reduction <add>, %3, %cst_6 [0] : vector<8x512xf32> to vector<512xf32>
    %7 = vector.shape_cast %6 : vector<512xf32> to vector<1x512xf32>
    %cst_7 = arith.constant 8.000000e+00 : f32
    %8 = vector.broadcast %cst_7 : f32 to vector<1x512xf32>
    %9 = arith.divf %7, %8 : vector<1x512xf32>
    %10 = vector.broadcast %9 : vector<1x512xf32> to vector<8x512xf32>
    %11 = arith.subf %3, %10 : vector<8x512xf32>
    %12 = arith.mulf %11, %11 : vector<8x512xf32>
    %cst_8 = arith.constant dense<0.000000e+00> : vector<512xf32>
    %13 = vector.multi_reduction <add>, %12, %cst_8 [0] : vector<8x512xf32> to vector<512xf32>
    %14 = vector.shape_cast %13 : vector<512xf32> to vector<1x512xf32>
    %cst_9 = arith.constant 8.000000e+00 : f32
    %15 = vector.broadcast %cst_9 : f32 to vector<1x512xf32>
    %16 = arith.divf %14, %15 : vector<1x512xf32>
    %17 = vector.broadcast %9 : vector<1x512xf32> to vector<8x512xf32>
    %18 = arith.subf %3, %17 : vector<8x512xf32>
    %cst_10 = arith.constant 9.99999974E-6 : f32
    %19 = vector.broadcast %cst_10 : f32 to vector<1x512xf32>
    %20 = arith.addf %16, %19 : vector<1x512xf32>
    %21 = math.rsqrt %20 : vector<1x512xf32>
    %22 = vector.broadcast %21 : vector<1x512xf32> to vector<8x512xf32>
    %23 = arith.mulf %18, %22 : vector<8x512xf32>
    %24 = vector.broadcast %4 : vector<1x512xf32> to vector<8x512xf32>
    %25 = arith.mulf %23, %24 : vector<8x512xf32>
    %26 = vector.broadcast %5 : vector<1x512xf32> to vector<8x512xf32>
    %27 = arith.addf %25, %26 : vector<8x512xf32>
    %cst_11 = arith.constant 0.000000e+00 : f32
    %28 = vector.broadcast %cst_11 : f32 to vector<8x512xf32>
    %29 = arith.cmpf oge, %27, %28 : vector<8x512xf32>
    %cst_12 = arith.constant 2.000000e-01 : f32
    %30 = vector.broadcast %cst_12 : f32 to vector<8x512xf32>
    %31 = arith.mulf %30, %27 : vector<8x512xf32>
    %32 = arith.select %29, %27, %31 : vector<8x512xi1>, vector<8x512xf32>
    %33 = arith.truncf %32 : vector<8x512xf32> to vector<8x512xbf16>
    %c0_13 = arith.constant 0 : index
    %c512 = arith.constant 512 : index
    %34 = vector.load %arg1[%c0_13, %c512] : memref<512x1152xbf16, #tpu.memory_space<vmem>>, vector<512x512xbf16>
    %cst_14 = arith.constant dense<0.000000e+00> : vector<8x512xf32>
    %35 = tpu.matmul %33, %34, %cst_14 {dimension_numbers = #tpu.dot_dimension_numbers<[1], [0], [0], [1], [0, 0, 1, 1], [], []>} : vector<8x512xbf16>, vector<512x512xbf16>, vector<8x512xf32> -> vector<8x512xf32>
    %c2 = arith.constant 2 : index
    %c0_15 = arith.constant 0 : index
    %36 = vector.load %arg2[%c2, %c0_15] : memref<5x512xf32, #tpu.memory_space<vmem>>, vector<1x512xf32>
    %c3 = arith.constant 3 : index
    %c0_16 = arith.constant 0 : index
    %37 = vector.load %arg2[%c3, %c0_16] : memref<5x512xf32, #tpu.memory_space<vmem>>, vector<1x512xf32>
    %cst_17 = arith.constant dense<0.000000e+00> : vector<512xf32>
    %38 = vector.multi_reduction <add>, %35, %cst_17 [0] : vector<8x512xf32> to vector<512xf32>
    %39 = vector.shape_cast %38 : vector<512xf32> to vector<1x512xf32>
    %cst_18 = arith.constant 8.000000e+00 : f32
    %40 = vector.broadcast %cst_18 : f32 to vector<1x512xf32>
    %41 = arith.divf %39, %40 : vector<1x512xf32>
    %42 = vector.broadcast %41 : vector<1x512xf32> to vector<8x512xf32>
    %43 = arith.subf %35, %42 : vector<8x512xf32>
    %44 = arith.mulf %43, %43 : vector<8x512xf32>
    %cst_19 = arith.constant dense<0.000000e+00> : vector<512xf32>
    %45 = vector.multi_reduction <add>, %44, %cst_19 [0] : vector<8x512xf32> to vector<512xf32>
    %46 = vector.shape_cast %45 : vector<512xf32> to vector<1x512xf32>
    %cst_20 = arith.constant 8.000000e+00 : f32
    %47 = vector.broadcast %cst_20 : f32 to vector<1x512xf32>
    %48 = arith.divf %46, %47 : vector<1x512xf32>
    %49 = vector.broadcast %41 : vector<1x512xf32> to vector<8x512xf32>
    %50 = arith.subf %35, %49 : vector<8x512xf32>
    %cst_21 = arith.constant 9.99999974E-6 : f32
    %51 = vector.broadcast %cst_21 : f32 to vector<1x512xf32>
    %52 = arith.addf %48, %51 : vector<1x512xf32>
    %53 = math.rsqrt %52 : vector<1x512xf32>
    %54 = vector.broadcast %53 : vector<1x512xf32> to vector<8x512xf32>
    %55 = arith.mulf %50, %54 : vector<8x512xf32>
    %56 = vector.broadcast %36 : vector<1x512xf32> to vector<8x512xf32>
    %57 = arith.mulf %55, %56 : vector<8x512xf32>
    %58 = vector.broadcast %37 : vector<1x512xf32> to vector<8x512xf32>
    %59 = arith.addf %57, %58 : vector<8x512xf32>
    %cst_22 = arith.constant 0.000000e+00 : f32
    %60 = vector.broadcast %cst_22 : f32 to vector<8x512xf32>
    %61 = arith.cmpf oge, %59, %60 : vector<8x512xf32>
    %cst_23 = arith.constant 2.000000e-01 : f32
    %62 = vector.broadcast %cst_23 : f32 to vector<8x512xf32>
    %63 = arith.mulf %62, %59 : vector<8x512xf32>
    %64 = arith.select %61, %59, %63 : vector<8x512xi1>, vector<8x512xf32>
    %65 = arith.truncf %64 : vector<8x512xf32> to vector<8x512xbf16>
    %c0_24 = arith.constant 0 : index
    %c1024 = arith.constant 1024 : index
    %66 = vector.load %arg1[%c0_24, %c1024] : memref<512x1152xbf16, #tpu.memory_space<vmem>>, vector<512x128xbf16>
    %cst_25 = arith.constant dense<0.000000e+00> : vector<8x128xf32>
    %67 = tpu.matmul %65, %66, %cst_25 {dimension_numbers = #tpu.dot_dimension_numbers<[1], [0], [0], [1], [0, 0, 1, 1], [], []>} : vector<8x512xbf16>, vector<512x128xbf16>, vector<8x128xf32> -> vector<8x128xf32>
    %c4 = arith.constant 4 : index
    %c0_26 = arith.constant 0 : index
    %68 = vector.load %arg2[%c4, %c0_26] : memref<5x512xf32, #tpu.memory_space<vmem>>, vector<1x128xf32>
    %69 = vector.broadcast %68 : vector<1x128xf32> to vector<8x128xf32>
    %70 = arith.addf %67, %69 : vector<8x128xf32>
    %c0_27 = arith.constant 0 : index
    %c0_28 = arith.constant 0 : index
    %71 = vector.load %arg3[%c0_27, %c0_28] : memref<8x128xf32, #tpu.memory_space<vmem>>, vector<8x128xf32>
    tpu.vector_store %arg3[%c0_27, %c0_28], %70 {strides = array<i32>} : memref<8x128xf32, #tpu.memory_space<vmem>>, vector<8x128xf32>,
    return
  }
}

</mosaic_0001>

<llo_original>
// kernel: tpu_custom_call.1
$region0: #{tpu_custom_call.1}
  #allocation0 [shape = 'u32[]', space=smem, size = 0x4, offset = 0x4, fixed_abs, tag = 'smem constant byte address 0x4 - core index']
  #allocation1 [shape = 'u32[144,128]{1,0:T(1,128)}', space=vmem, size = 0x12000, scoped, tag = 'internal scratch']
  %s0 = inlined_call_operand.hbm [shape: f32[8,512], index: 0, kind: input, shape index: {}]
  %s1 = inlined_call_operand.hbm [shape: bf16[512,1152], index: 1, kind: input, shape index: {}]
  %s2 = inlined_call_operand.hbm [shape: f32[5,512], index: 2, kind: input, shape index: {}]
  %s3 = inlined_call_operand.hbm [shape: f32[8,128], index: 3, kind: output, shape index: {}]
  %s4 = sld [smem:[#allocation0]]
  $region34: #{tpu_custom_call.1} parent=0
    _
  %s6 = ssub.s32 1, %s4
  %s7 = scalar_select 0, %s6, %s4
  $region1: #{tpu_custom_call.1} parent=0
    #allocation2 [shape = 'u8[16384]{0}', space=vmem, size = 0x4000, scoped, tag = 'input window, operand 0, single buffered']
    #allocation3 [shape = 's32[1]{0}', space=sflag, size = 0x4, scoped, tag = 'scoped memory for tpu_custom_call.1']
    #allocation4 [shape = 's32[1]{0}', space=sflag, size = 0x4, scoped, tag = 'scoped memory for tpu_custom_call.1']
    #allocation5 [shape = 'u8[1179648]{0}', space=vmem, size = 0x120000, scoped, tag = 'input window, operand 1, single buffered']
    #allocation6 [shape = 's32[1]{0}', space=sflag, size = 0x4, scoped, tag = 'scoped memory for tpu_custom_call.1']
    #allocation7 [shape = 'u8[16384]{0}', space=vmem, size = 0x4000, scoped, tag = 'input window, operand 2, single buffered']
    #allocation8 [shape = 'u8[4096]{0}', space=vmem, size = 0x1000, scoped, tag = 'output window, operand 0, single buffered']
    %8 = vsyncpa [#allocation3], 0
    %9 = vsyncpa [#allocation6], 0
    %10 = vsyncpa [#allocation4], 0
    // Predicated region
    $region2: #{tpu_custom_call.1} parent=1 // pred_check
      _
    $region3: #{tpu_custom_call.1} parent=1 // pred_check_branch
      %12 = sbr.rel (0) target = $region5
    $region4: #{tpu_custom_call.1} parent=1 // pred_region
      %s14 = ssub.s32 512, 512
      %15 = vsyncadd [#allocation3], %s14
      %s17 = sshll.u32 [#allocation2], 4
      %s18 = int_to_ptr.vmem [resolvable:$true] %s17
      %20 = dma.hbm_to_vmem [thread:$0]  %s0, 512, %s18, [#allocation3]
    $region5: #{tpu_custom_call.1} parent=1 // pred_fallthru
      _
    // Predicated region
    $region6: #{tpu_custom_call.1} parent=1 // pred_check
      _
    $region7: #{tpu_custom_call.1} parent=1 // pred_check_branch
      %22 = sbr.rel (0) target = $region9
    $region8: #{tpu_custom_call.1} parent=1 // pred_region
      %s24 = ssub.s32 36864, 36864
      %25 = vsyncadd [#allocation6], %s24
      %s26 = sshll.u32 [#allocation5], 4
      %s27 = int_to_ptr.vmem [resolvable:$true] %s26
      %32 = dma.hbm_to_vmem [thread:$0]  %s1, 36864, %s27, [#allocation6], 576, 576, 36
    $region9: #{tpu_custom_call.1} parent=1 // pred_fallthru
      _
    // Predicated region
    $region10: #{tpu_custom_call.1} parent=1 // pred_check
      _
    $region11: #{tpu_custom_call.1} parent=1 // pred_check_branch
      %34 = sbr.rel (0) target = $region13
    $region12: #{tpu_custom_call.1} parent=1 // pred_region
      %s36 = ssub.s32 512, 512
      %37 = vsyncadd [#allocation6], %s36
      %s39 = sshll.u32 [#allocation7], 4
      %s40 = int_to_ptr.vmem [resolvable:$true] %s39
      %42 = dma.hbm_to_vmem [thread:$0]  %s2, 512, %s40, [#allocation6]
    $region13: #{tpu_custom_call.1} parent=1 // pred_fallthru
      _
    // Predicated region
    $region14: #{tpu_custom_call.1} parent=1 // pred_check
      _
    $region15: #{tpu_custom_call.1} parent=1 // pred_check_branch
      %44 = sbr.rel (0) target = $region17
    $region16: #{tpu_custom_call.1} parent=1 // pred_region
      %45 = dma.done [#allocation3], 512
    $region17: #{tpu_custom_call.1} parent=1 // pred_fallthru
      _
    // Predicated region
    $region18: #{tpu_custom_call.1} parent=1 // pred_check
      _
    $region19: #{tpu_custom_call.1} parent=1 // pred_check_branch
      %47 = sbr.rel (0) target = $region21
    $region20: #{tpu_custom_call.1} parent=1 // pred_region
      %48 = dma.done [#allocation6], 36864
    $region21: #{tpu_custom_call.1} parent=1 // pred_fallthru
      _
    // Predicated region
    $region22: #{tpu_custom_call.1} parent=1 // pred_check
      _
    $region23: #{tpu_custom_call.1} parent=1 // pred_check_branch
      %50 = sbr.rel (0) target = $region25
    $region24: #{tpu_custom_call.1} parent=1 // pred_region
      %51 = dma.done [#allocation6], 512
    $region25: #{tpu_custom_call.1} parent=1 // pred_fallthru
      _
    %v53 = vld [vmem:[#allocation2] sm:$0xff]
    %v54 = vld [vmem:[#allocation2 + $0x8] sm:$0xff]
    %v55 = vld [vmem:[#allocation2 + $0x10] sm:$0xff]
    %v56 = vld [vmem:[#allocation2 + $0x18] sm:$0xff]
    %v57 = vpack.c.bf16 %v53, %v53
    %v58 = vpack.c.bf16 %v54, %v54
    %v59 = vpack.c.bf16 %v55, %v55
    %v60 = vpack.c.bf16 %v56, %v56
    %v61 = vld [vmem:[#allocation5] sm:$0xff]
    %v62 = vld [vmem:[#allocation5 + $0x8] sm:$0xff]
    %v63 = vld [vmem:[#allocation5 + $0x24] sm:$0xff]
    %v64 = vld [vmem:[#allocation5 + $0x2c] sm:$0xff]
    %v65 = vld [vmem:[#allocation5 + $0x48] sm:$0xff]
    %v66 = vld [vmem:[#allocation5 + $0x50] sm:$0xff]
    %v67 = vld [vmem:[#allocation5 + $0x6c] sm:$0xff]
    %v68 = vld [vmem:[#allocation5 + $0x74] sm:$0xff]
    %v69 = vld [vmem:[#allocation5 + $0x90] sm:$0xff]
    %v70 = vld [vmem:[#allocation5 + $0x98] sm:$0xff]
    %v71 = vld [vmem:[#allocation5 + $0xb4] sm:$0xff]
    %v72 = vld [vmem:[#allocation5 + $0xbc] sm:$0xff]
    %v73 = vld [vmem:[#allocation5 + $0xd8] sm:$0xff]
    %v74 = vld [vmem:[#allocation5 + $0xe0] sm:$0xff]
    %v75 = vld [vmem:[#allocation5 + $0xfc] sm:$0xff]
    %v76 = vld [vmem:[#allocation5 + $0x104] sm:$0xff]
    %v77 = vld [vmem:[#allocation5 + $0x120] sm:$0xff]
    %v78 = vld [vmem:[#allocation5 + $0x128] sm:$0xff]
    %v79 = vld [vmem:[#allocation5 + $0x144] sm:$0xff]
    %v80 = vld [vmem:[#allocation5 + $0x14c] sm:$0xff]
    %v81 = vld [vmem:[#allocation5 + $0x168] sm:$0xff]
    %v82 = vld [vmem:[#allocation5 + $0x170] sm:$0xff]
    %v83 = vld [vmem:[#allocation5 + $0x18c] sm:$0xff]
    %v84 = vld [vmem:[#allocation5 + $0x194] sm:$0xff]
    %v85 = vld [vmem:[#allocation5 + $0x1b0] sm:$0xff]
    %v86 = vld [vmem:[#allocation5 + $0x1b8] sm:$0xff]
    %v87 = vld [vmem:[#allocation5 + $0x1d4] sm:$0xff]
    %v88 = vld [vmem:[#allocation5 + $0x1dc] sm:$0xff]
    %v89 = vld [vmem:[#allocation5 + $0x1f8] sm:$0xff]
    %v90 = vld [vmem:[#allocation5 + $0x200] sm:$0xff]
    %v91 = vld [vmem:[#allocation5 + $0x21c] sm:$0xff]
    %v92 = vld [vmem:[#allocation5 + $0x224] sm:$0xff]
    %v93 = vld [vmem:[#allocation5 + $0x240] sm:$0xff]
    %v94 = vld [vmem:[#allocation5 + $0x248] sm:$0xff]
    %v95 = vld [vmem:[#allocation5 + $0x264] sm:$0xff]
    %v96 = vld [vmem:[#allocation5 + $0x26c] sm:$0xff]
    %v97 = vld [vmem:[#allocation5 + $0x288] sm:$0xff]
    %v98 = vld [vmem:[#allocation5 + $0x290] sm:$0xff]
    %v99 = vld [vmem:[#allocation5 + $0x2ac] sm:$0xff]
    %v100 = vld [vmem:[#allocation5 + $0x2b4] sm:$0xff]
    %v101 = vld [vmem:[#allocation5 + $0x2d0] sm:$0xff]
    %v102 = vld [vmem:[#allocation5 + $0x2d8] sm:$0xff]
    %v103 = vld [vmem:[#allocation5 + $0x2f4] sm:$0xff]
    %v104 = vld [vmem:[#allocation5 + $0x2fc] sm:$0xff]
    %v105 = vld [vmem:[#allocation5 + $0x318] sm:$0xff]
    %v106 = vld [vmem:[#allocation5 + $0x320] sm:$0xff]
    %v107 = vld [vmem:[#allocation5 + $0x33c] sm:$0xff]
    %v108 = vld [vmem:[#allocation5 + $0x344] sm:$0xff]
    %v109 = vld [vmem:[#allocation5 + $0x360] sm:$0xff]
    %v110 = vld [vmem:[#allocation5 + $0x368] sm:$0xff]
    %v111 = vld [vmem:[#allocation5 + $0x384] sm:$0xff]
    %v112 = vld [vmem:[#allocation5 + $0x38c] sm:$0xff]
    %v113 = vld [vmem:[#allocation5 + $0x3a8] sm:$0xff]
    %v114 = vld [vmem:[#allocation5 + $0x3b0] sm:$0xff]
    %v115 = vld [vmem:[#allocation5 + $0x3cc] sm:$0xff]
    %v116 = vld [vmem:[#allocation5 + $0x3d4] sm:$0xff]
    %v117 = vld [vmem:[#allocation5 + $0x3f0] sm:$0xff]
    %v118 = vld [vmem:[#allocation5 + $0x3f8] sm:$0xff]
    %v119 = vld [vmem:[#allocation5 + $0x414] sm:$0xff]
    %v120 = vld [vmem:[#allocation5 + $0x41c] sm:$0xff]
    %v121 = vld [vmem:[#allocation5 + $0x438] sm:$0xff]
    %v122 = vld [vmem:[#allocation5 + $0x440] sm:$0xff]
    %v123 = vld [vmem:[#allocation5 + $0x45c] sm:$0xff]
    %v124 = vld [vmem:[#allocation5 + $0x464] sm:$0xff]
    %v125 = vld [vmem:[#allocation5 + $0x480] sm:$0xff]
    %v126 = vld [vmem:[#allocation5 + $0x488] sm:$0xff]
    %v127 = vld [vmem:[#allocation5 + $0x4a4] sm:$0xff]
    %v128 = vld [vmem:[#allocation5 + $0x4ac] sm:$0xff]
    %v129 = vld [vmem:[#allocation5 + $0x4c8] sm:$0xff]
    %v130 = vld [vmem:[#allocation5 + $0x4d0] sm:$0xff]
    %v131 = vld [vmem:[#allocation5 + $0x4ec] sm:$0xff]
    %v132 = vld [vmem:[#allocation5 + $0x4f4] sm:$0xff]
    %v133 = vld [vmem:[#allocation5 + $0x510] sm:$0xff]
    %v134 = vld [vmem:[#allocation5 + $0x518] sm:$0xff]
    %v135 = vld [vmem:[#allocation5 + $0x534] sm:$0xff]
    %v136 = vld [vmem:[#allocation5 + $0x53c] sm:$0xff]
    %v137 = vld [vmem:[#allocation5 + $0x558] sm:$0xff]
    %v138 = vld [vmem:[#allocation5 + $0x560] sm:$0xff]
    %v139 = vld [vmem:[#allocation5 + $0x57c] sm:$0xff]
    %v140 = vld [vmem:[#allocation5 + $0x584] sm:$0xff]
    %v141 = vld [vmem:[#allocation5 + $0x5a0] sm:$0xff]
    %v142 = vld [vmem:[#allocation5 + $0x5a8] sm:$0xff]
    %v143 = vld [vmem:[#allocation5 + $0x5c4] sm:$0xff]
    %v144 = vld [vmem:[#allocation5 + $0x5cc] sm:$0xff]
    %v145 = vld [vmem:[#allocation5 + $0x5e8] sm:$0xff]
    %v146 = vld [vmem:[#allocation5 + $0x5f0] sm:$0xff]
    %v147 = vld [vmem:[#allocation5 + $0x60c] sm:$0xff]
    %v148 = vld [vmem:[#allocation5 + $0x614] sm:$0xff]
    %v149 = vld [vmem:[#allocation5 + $0x630] sm:$0xff]
    %v150 = vld [vmem:[#allocation5 + $0x638] sm:$0xff]
    %v151 = vld [vmem:[#allocation5 + $0x654] sm:$0xff]
    %v152 = vld [vmem:[#allocation5 + $0x65c] sm:$0xff]
    %v153 = vld [vmem:[#allocation5 + $0x678] sm:$0xff]
    %v154 = vld [vmem:[#allocation5 + $0x680] sm:$0xff]
    %v155 = vld [vmem:[#allocation5 + $0x69c] sm:$0xff]
    %v156 = vld [vmem:[#allocation5 + $0x6a4] sm:$0xff]
    %v157 = vld [vmem:[#allocation5 + $0x6c0] sm:$0xff]
    %v158 = vld [vmem:[#allocation5 + $0x6c8] sm:$0xff]
    %v159 = vld [vmem:[#allocation5 + $0x6e4] sm:$0xff]
    %v160 = vld [vmem:[#allocation5 + $0x6ec] sm:$0xff]
    %v161 = vld [vmem:[#allocation5 + $0x708] sm:$0xff]
    %v162 = vld [vmem:[#allocation5 + $0x710] sm:$0xff]
    %v163 = vld [vmem:[#allocation5 + $0x72c] sm:$0xff]
    %v164 = vld [vmem:[#allocation5 + $0x734] sm:$0xff]
    %v165 = vld [vmem:[#allocation5 + $0x750] sm:$0xff]
    %v166 = vld [vmem:[#allocation5 + $0x758] sm:$0xff]
    %v167 = vld [vmem:[#allocation5 + $0x774] sm:$0xff]
    %v168 = vld [vmem:[#allocation5 + $0x77c] sm:$0xff]
    %v169 = vld [vmem:[#allocation5 + $0x798] sm:$0xff]
    %v170 = vld [vmem:[#allocation5 + $0x7a0] sm:$0xff]
    %v171 = vld [vmem:[#allocation5 + $0x7bc] sm:$0xff]
    %v172 = vld [vmem:[#allocation5 + $0x7c4] sm:$0xff]
    %v173 = vld [vmem:[#allocation5 + $0x7e0] sm:$0xff]
    %v174 = vld [vmem:[#allocation5 + $0x7e8] sm:$0xff]
    %v175 = vld [vmem:[#allocation5 + $0x804] sm:$0xff]
    %v176 = vld [vmem:[#allocation5 + $0x80c] sm:$0xff]
    %v177 = vld [vmem:[#allocation5 + $0x828] sm:$0xff]
    %v178 = vld [vmem:[#allocation5 + $0x830] sm:$0xff]
    %v179 = vld [vmem:[#allocation5 + $0x84c] sm:$0xff]
    %v180 = vld [vmem:[#allocation5 + $0x854] sm:$0xff]
    %v181 = vld [vmem:[#allocation5 + $0x870] sm:$0xff]
    %v182 = vld [vmem:[#allocation5 + $0x878] sm:$0xff]
    %v183 = vld [vmem:[#allocation5 + $0x894] sm:$0xff]
    %v184 = vld [vmem:[#allocation5 + $0x89c] sm:$0xff]
    %v185 = vld [vmem:[#allocation5 + $0x8b8] sm:$0xff]
    %v186 = vld [vmem:[#allocation5 + $0x8c0] sm:$0xff]
    %v187 = vld [vmem:[#allocation5 + $0x8dc] sm:$0xff]
    %v188 = vld [vmem:[#allocation5 + $0x8e4] sm:$0xff]
    %v317 = vunpack.c.l.b16 %v61
    %v318 = vunpack.c.h.b16 %v61
    %v319 = vunpack.c.l.b16 %v62
    %v320 = vunpack.c.h.b16 %v62
    %v321 = vunpack.c.l.b16 %v63
    %v322 = vunpack.c.h.b16 %v63
    %v323 = vunpack.c.l.b16 %v64
    %v324 = vunpack.c.h.b16 %v64
    %v325 = vunpack.c.l.b16 %v65
    %v326 = vunpack.c.h.b16 %v65
    %v327 = vunpack.c.l.b16 %v66
    %v328 = vunpack.c.h.b16 %v66
    %v329 = vunpack.c.l.b16 %v67
    %v330 = vunpack.c.h.b16 %v67
    %v331 = vunpack.c.l.b16 %v68
    %v332 = vunpack.c.h.b16 %v68
    %v333 = vunpack.c.l.b16 %v69
    %v334 = vunpack.c.h.b16 %v69
    %v335 = vunpack.c.l.b16 %v70
    %v336 = vunpack.c.h.b16 %v70
    %v337 = vunpack.c.l.b16 %v71
    %v338 = vunpack.c.h.b16 %v71
    %v339 = vunpack.c.l.b16 %v72
    %v340 = vunpack.c.h.b16 %v72
    %v341 = vunpack.c.l.b16 %v73
    %v342 = vunpack.c.h.b16 %v73
    %v343 = vunpack.c.l.b16 %v74
    %v344 = vunpack.c.h.b16 %v74
    %v345 = vunpack.c.l.b16 %v75
    %v346 = vunpack.c.h.b16 %v75
    %v347 = vunpack.c.l.b16 %v76
    %v348 = vunpack.c.h.b16 %v76
    %v349 = vunpack.c.l.b16 %v77
    %v350 = vunpack.c.h.b16 %v77
    %v351 = vunpack.c.l.b16 %v78
    %v352 = vunpack.c.h.b16 %v78
    %v353 = vunpack.c.l.b16 %v79
    %v354 = vunpack.c.h.b16 %v79
    %v355 = vunpack.c.l.b16 %v80
    %v356 = vunpack.c.h.b16 %v80
    %v357 = vunpack.c.l.b16 %v81
    %v358 = vunpack.c.h.b16 %v81
    %v359 = vunpack.c.l.b16 %v82
    %v360 = vunpack.c.h.b16 %v82
    %v361 = vunpack.c.l.b16 %v83
    %v362 = vunpack.c.h.b16 %v83
    %v363 = vunpack.c.l.b16 %v84
    %v364 = vunpack.c.h.b16 %v84
    %v365 = vunpack.c.l.b16 %v85
    %v366 = vunpack.c.h.b16 %v85
    %v367 = vunpack.c.l.b16 %v86
    %v368 = vunpack.c.h.b16 %v86
    %v369 = vunpack.c.l.b16 %v87
    %v370 = vunpack.c.h.b16 %v87
    %v371 = vunpack.c.l.b16 %v88
    %v372 = vunpack.c.h.b16 %v88
    %v373 = vunpack.c.l.b16 %v89
    %v374 = vunpack.c.h.b16 %v89
    %v375 = vunpack.c.l.b16 %v90
    %v376 = vunpack.c.h.b16 %v90
    %v377 = vunpack.c.l.b16 %v91
    %v378 = vunpack.c.h.b16 %v91
    %v379 = vunpack.c.l.b16 %v92
    %v380 = vunpack.c.h.b16 %v92
    %v381 = vunpack.c.l.b16 %v93
    %v382 = vunpack.c.h.b16 %v93
    %v383 = vunpack.c.l.b16 %v94
    %v384 = vunpack.c.h.b16 %v94
    %v385 = vunpack.c.l.b16 %v95
    %v386 = vunpack.c.h.b16 %v95
    %v387 = vunpack.c.l.b16 %v96
    %v388 = vunpack.c.h.b16 %v96
    %v389 = vunpack.c.l.b16 %v97
    %v390 = vunpack.c.h.b16 %v97
    %v391 = vunpack.c.l.b16 %v98
    %v392 = vunpack.c.h.b16 %v98
    %v393 = vunpack.c.l.b16 %v99
    %v394 = vunpack.c.h.b16 %v99
    %v395 = vunpack.c.l.b16 %v100
    %v396 = vunpack.c.h.b16 %v100
    %v397 = vunpack.c.l.b16 %v101
    %v398 = vunpack.c.h.b16 %v101
    %v399 = vunpack.c.l.b16 %v102
    %v400 = vunpack.c.h.b16 %v102
    %v401 = vunpack.c.l.b16 %v103
    %v402 = vunpack.c.h.b16 %v103
    %v403 = vunpack.c.l.b16 %v104
    %v404 = vunpack.c.h.b16 %v104
    %v405 = vunpack.c.l.b16 %v105
    %v406 = vunpack.c.h.b16 %v105
    %v407 = vunpack.c.l.b16 %v106
    %v408 = vunpack.c.h.b16 %v106
    %v409 = vunpack.c.l.b16 %v107
    %v410 = vunpack.c.h.b16 %v107
    %v411 = vunpack.c.l.b16 %v108
    %v412 = vunpack.c.h.b16 %v108
    %v413 = vunpack.c.l.b16 %v109
    %v414 = vunpack.c.h.b16 %v109
    %v415 = vunpack.c.l.b16 %v110
    %v416 = vunpack.c.h.b16 %v110
    %v417 = vunpack.c.l.b16 %v111
    %v418 = vunpack.c.h.b16 %v111
    %v419 = vunpack.c.l.b16 %v112
    %v420 = vunpack.c.h.b16 %v112
    %v421 = vunpack.c.l.b16 %v113
    %v422 = vunpack.c.h.b16 %v113
    %v423 = vunpack.c.l.b16 %v114
    %v424 = vunpack.c.h.b16 %v114
    %v425 = vunpack.c.l.b16 %v115
    %v426 = vunpack.c.h.b16 %v115
    %v427 = vunpack.c.l.b16 %v116
    %v428 = vunpack.c.h.b16 %v116
    %v429 = vunpack.c.l.b16 %v117
    %v430 = vunpack.c.h.b16 %v117
    %v431 = vunpack.c.l.b16 %v118
    %v432 = vunpack.c.h.b16 %v118
    %v433 = vunpack.c.l.b16 %v119
    %v434 = vunpack.c.h.b16 %v119
    %v435 = vunpack.c.l.b16 %v120
    %v436 = vunpack.c.h.b16 %v120
    %v437 = vunpack.c.l.b16 %v121
    %v438 = vunpack.c.h.b16 %v121
    %v439 = vunpack.c.l.b16 %v122
    %v440 = vunpack.c.h.b16 %v122
    %v441 = vunpack.c.l.b16 %v123
    %v442 = vunpack.c.h.b16 %v123
    %v443 = vunpack.c.l.b16 %v124
    %v444 = vunpack.c.h.b16 %v124
    %v445 = vunpack.c.l.b16 %v125
    %v446 = vunpack.c.h.b16 %v125
    %v447 = vunpack.c.l.b16 %v126
    %v448 = vunpack.c.h.b16 %v126
    %v449 = vunpack.c.l.b16 %v127
    %v450 = vunpack.c.h.b16 %v127
    %v451 = vunpack.c.l.b16 %v128
    %v452 = vunpack.c.h.b16 %v128
    %v453 = vunpack.c.l.b16 %v129
    %v454 = vunpack.c.h.b16 %v129
    %v455 = vunpack.c.l.b16 %v130
    %v456 = vunpack.c.h.b16 %v130
    %v457 = vunpack.c.l.b16 %v131
    %v458 = vunpack.c.h.b16 %v131
    %v459 = vunpack.c.l.b16 %v132
    %v460 = vunpack.c.h.b16 %v132
    %v461 = vunpack.c.l.b16 %v133
    %v462 = vunpack.c.h.b16 %v133
    %v463 = vunpack.c.l.b16 %v134
    %v464 = vunpack.c.h.b16 %v134
    %v465 = vunpack.c.l.b16 %v135
    %v466 = vunpack.c.h.b16 %v135
    %v467 = vunpack.c.l.b16 %v136
    %v468 = vunpack.c.h.b16 %v136
    %v469 = vunpack.c.l.b16 %v137
    %v470 = vunpack.c.h.b16 %v137
    %v471 = vunpack.c.l.b16 %v138
    %v472 = vunpack.c.h.b16 %v138
    %v473 = vunpack.c.l.b16 %v139
    %v474 = vunpack.c.h.b16 %v139
    %v475 = vunpack.c.l.b16 %v140
    %v476 = vunpack.c.h.b16 %v140
    %v477 = vunpack.c.l.b16 %v141
    %v478 = vunpack.c.h.b16 %v141
    %v479 = vunpack.c.l.b16 %v142
    %v480 = vunpack.c.h.b16 %v142
    %v481 = vunpack.c.l.b16 %v143
    %v482 = vunpack.c.h.b16 %v143
    %v483 = vunpack.c.l.b16 %v144
    %v484 = vunpack.c.h.b16 %v144
    %v485 = vunpack.c.l.b16 %v145
    %v486 = vunpack.c.h.b16 %v145
    %v487 = vunpack.c.l.b16 %v146
    %v488 = vunpack.c.h.b16 %v146
    %v489 = vunpack.c.l.b16 %v147
    %v490 = vunpack.c.h.b16 %v147
    %v491 = vunpack.c.l.b16 %v148
    %v492 = vunpack.c.h.b16 %v148
    %v493 = vunpack.c.l.b16 %v149
    %v494 = vunpack.c.h.b16 %v149
    %v495 = vunpack.c.l.b16 %v150
    %v496 = vunpack.c.h.b16 %v150
    %v497 = vunpack.c.l.b16 %v151
    %v498 = vunpack.c.h.b16 %v151
    %v499 = vunpack.c.l.b16 %v152
    %v500 = vunpack.c.h.b16 %v152
    %v501 = vunpack.c.l.b16 %v153
    %v502 = vunpack.c.h.b16 %v153
    %v503 = vunpack.c.l.b16 %v154
    %v504 = vunpack.c.h.b16 %v154
    %v505 = vunpack.c.l.b16 %v155
    %v506 = vunpack.c.h.b16 %v155
    %v507 = vunpack.c.l.b16 %v156
    %v508 = vunpack.c.h.b16 %v156
    %v509 = vunpack.c.l.b16 %v157
    %v510 = vunpack.c.h.b16 %v157
    %v511 = vunpack.c.l.b16 %v158
    %v512 = vunpack.c.h.b16 %v158
    %v513 = vunpack.c.l.b16 %v159
    %v514 = vunpack.c.h.b16 %v159
    %v515 = vunpack.c.l.b16 %v160
    %v516 = vunpack.c.h.b16 %v160
    %v517 = vunpack.c.l.b16 %v161
    %v518 = vunpack.c.h.b16 %v161
    %v519 = vunpack.c.l.b16 %v162
    %v520 = vunpack.c.h.b16 %v162
    %v521 = vunpack.c.l.b16 %v163
    %v522 = vunpack.c.h.b16 %v163
    %v523 = vunpack.c.l.b16 %v164
    %v524 = vunpack.c.h.b16 %v164
    %v525 = vunpack.c.l.b16 %v165
    %v526 = vunpack.c.h.b16 %v165
    %v527 = vunpack.c.l.b16 %v166
    %v528 = vunpack.c.h.b16 %v166
    %v529 = vunpack.c.l.b16 %v167
    %v530 = vunpack.c.h.b16 %v167
    %v531 = vunpack.c.l.b16 %v168
    %v532 = vunpack.c.h.b16 %v168
    %v533 = vunpack.c.l.b16 %v169
    %v534 = vunpack.c.h.b16 %v169
    %v535 = vunpack.c.l.b16 %v170
    %v536 = vunpack.c.h.b16 %v170
    %v537 = vunpack.c.l.b16 %v171
    %v538 = vunpack.c.h.b16 %v171
    %v539 = vunpack.c.l.b16 %v172
    %v540 = vunpack.c.h.b16 %v172
    %v541 = vunpack.c.l.b16 %v173
    %v542 = vunpack.c.h.b16 %v173
    %v543 = vunpack.c.l.b16 %v174
    %v544 = vunpack.c.h.b16 %v174
    %v545 = vunpack.c.l.b16 %v175
    %v546 = vunpack.c.h.b16 %v175
    %v547 = vunpack.c.l.b16 %v176
    %v548 = vunpack.c.h.b16 %v176
    %v549 = vunpack.c.l.b16 %v177
    %v550 = vunpack.c.h.b16 %v177
    %v551 = vunpack.c.l.b16 %v178
    %v552 = vunpack.c.h.b16 %v178
    %v553 = vunpack.c.l.b16 %v179
    %v554 = vunpack.c.h.b16 %v179
    %v555 = vunpack.c.l.b16 %v180
    %v556 = vunpack.c.h.b16 %v180
    %v557 = vunpack.c.l.b16 %v181
    %v558 = vunpack.c.h.b16 %v181
    %v559 = vunpack.c.l.b16 %v182
    %v560 = vunpack.c.h.b16 %v182
    %v561 = vunpack.c.l.b16 %v183
    %v562 = vunpack.c.h.b16 %v183
    %v563 = vunpack.c.l.b16 %v184
    %v564 = vunpack.c.h.b16 %v184
    %v565 = vunpack.c.l.b16 %v185
    %v566 = vunpack.c.h.b16 %v185
    %v567 = vunpack.c.l.b16 %v186
    %v568 = vunpack.c.h.b16 %v186
    %v569 = vunpack.c.l.b16 %v187
    %v570 = vunpack.c.h.b16 %v187
    %v571 = vunpack.c.l.b16 %v188
    %v572 = vunpack.c.h.b16 %v188
    %v573 = vpack.c.b16 %v321, %v317
    %v574 = vpack.c.b16 %v322, %v318
    %v575 = vpack.c.b16 %v323, %v319
    %v576 = vpack.c.b16 %v324, %v320
    %v577 = vpack.c.b16 %v329, %v325
    %v578 = vpack.c.b16 %v330, %v326
    %v579 = vpack.c.b16 %v331, %v327
    %v580 = vpack.c.b16 %v332, %v328
    %v581 = vpack.c.b16 %v337, %v333
    %v582 = vpack.c.b16 %v338, %v334
    %v583 = vpack.c.b16 %v339, %v335
    %v584 = vpack.c.b16 %v340, %v336
    %v585 = vpack.c.b16 %v345, %v341
    %v586 = vpack.c.b16 %v346, %v342
    %v587 = vpack.c.b16 %v347, %v343
    %v588 = vpack.c.b16 %v348, %v344
    %v589 = vpack.c.b16 %v353, %v349
    %v590 = vpack.c.b16 %v354, %v350
    %v591 = vpack.c.b16 %v355, %v351
    %v592 = vpack.c.b16 %v356, %v352
    %v593 = vpack.c.b16 %v361, %v357
    %v594 = vpack.c.b16 %v362, %v358
    %v595 = vpack.c.b16 %v363, %v359
    %v596 = vpack.c.b16 %v364, %v360
    %v597 = vpack.c.b16 %v369, %v365
    %v598 = vpack.c.b16 %v370, %v366
    %v599 = vpack.c.b16 %v371, %v367
    %v600 = vpack.c.b16 %v372, %v368
    %v601 = vpack.c.b16 %v377, %v373
    %v602 = vpack.c.b16 %v378, %v374
    %v603 = vpack.c.b16 %v379, %v375
    %v604 = vpack.c.b16 %v380, %v376
    %v605 = vpack.c.b16 %v385, %v381
    %v606 = vpack.c.b16 %v386, %v382
    %v607 = vpack.c.b16 %v387, %v383
    %v608 = vpack.c.b16 %v388, %v384
    %v609 = vpack.c.b16 %v393, %v389
    %v610 = vpack.c.b16 %v394, %v390
    %v611 = vpack.c.b16 %v395, %v391
    %v612 = vpack.c.b16 %v396, %v392
    %v613 = vpack.c.b16 %v401, %v397
    %v614 = vpack.c.b16 %v402, %v398
    %v615 = vpack.c.b16 %v403, %v399
    %v616 = vpack.c.b16 %v404, %v400
    %v617 = vpack.c.b16 %v409, %v405
    %v618 = vpack.c.b16 %v410, %v406
    %v619 = vpack.c.b16 %v411, %v407
    %v620 = vpack.c.b16 %v412, %v408
    %v621 = vpack.c.b16 %v417, %v413
    %v622 = vpack.c.b16 %v418, %v414
    %v623 = vpack.c.b16 %v419, %v415
    %v624 = vpack.c.b16 %v420, %v416
    %v625 = vpack.c.b16 %v425, %v421
    %v626 = vpack.c.b16 %v426, %v422
    %v627 = vpack.c.b16 %v427, %v423
    %v628 = vpack.c.b16 %v428, %v424
    %v629 = vpack.c.b16 %v433, %v429
    %v630 = vpack.c.b16 %v434, %v430
    %v631 = vpack.c.b16 %v435, %v431
    %v632 = vpack.c.b16 %v436, %v432
    %v633 = vpack.c.b16 %v441, %v437
    %v634 = vpack.c.b16 %v442, %v438
    %v635 = vpack.c.b16 %v443, %v439
    %v636 = vpack.c.b16 %v444, %v440
    %v637 = vpack.c.b16 %v449, %v445
    %v638 = vpack.c.b16 %v450, %v446
    %v639 = vpack.c.b16 %v451, %v447
    %v640 = vpack.c.b16 %v452, %v448
    %v641 = vpack.c.b16 %v457, %v453
    %v642 = vpack.c.b16 %v458, %v454
    %v643 = vpack.c.b16 %v459, %v455
    %v644 = vpack.c.b16 %v460, %v456
    %v645 = vpack.c.b16 %v465, %v461
    %v646 = vpack.c.b16 %v466, %v462
    %v647 = vpack.c.b16 %v467, %v463
    %v648 = vpack.c.b16 %v468, %v464
    %v649 = vpack.c.b16 %v473, %v469
    %v650 = vpack.c.b16 %v474, %v470
    %v651 = vpack.c.b16 %v475, %v471
    %v652 = vpack.c.b16 %v476, %v472
    %v653 = vpack.c.b16 %v481, %v477
    %v654 = vpack.c.b16 %v482, %v478
    %v655 = vpack.c.b16 %v483, %v479
    %v656 = vpack.c.b16 %v484, %v480
    %v657 = vpack.c.b16 %v489, %v485
    %v658 = vpack.c.b16 %v490, %v486
    %v659 = vpack.c.b16 %v491, %v487
    %v660 = vpack.c.b16 %v492, %v488
    %v661 = vpack.c.b16 %v497, %v493
    %v662 = vpack.c.b16 %v498, %v494
    %v663 = vpack.c.b16 %v499, %v495
    %v664 = vpack.c.b16 %v500, %v496
    %v665 = vpack.c.b16 %v505, %v501
    %v666 = vpack.c.b16 %v506, %v502
    %v667 = vpack.c.b16 %v507, %v503
    %v668 = vpack.c.b16 %v508, %v504
    %v669 = vpack.c.b16 %v513, %v509
    %v670 = vpack.c.b16 %v514, %v510
    %v671 = vpack.c.b16 %v515, %v511
    %v672 = vpack.c.b16 %v516, %v512
    %v673 = vpack.c.b16 %v521, %v517
    %v674 = vpack.c.b16 %v522, %v518
    %v675 = vpack.c.b16 %v523, %v519
    %v676 = vpack.c.b16 %v524, %v520
    %v677 = vpack.c.b16 %v529, %v525
    %v678 = vpack.c.b16 %v530, %v526
    %v679 = vpack.c.b16 %v531, %v527
    %v680 = vpack.c.b16 %v532, %v528
    %v681 = vpack.c.b16 %v537, %v533
    %v682 = vpack.c.b16 %v538, %v534
    %v683 = vpack.c.b16 %v539, %v535
    %v684 = vpack.c.b16 %v540, %v536
    %v685 = vpack.c.b16 %v545, %v541
    %v686 = vpack.c.b16 %v546, %v542
    %v687 = vpack.c.b16 %v547, %v543
    %v688 = vpack.c.b16 %v548, %v544
    %v689 = vpack.c.b16 %v553, %v549
    %v690 = vpack.c.b16 %v554, %v550
    %v691 = vpack.c.b16 %v555, %v551
    %v692 = vpack.c.b16 %v556, %v552
    %v693 = vpack.c.b16 %v561, %v557
    %v694 = vpack.c.b16 %v562, %v558
    %v695 = vpack.c.b16 %v563, %v559
    %v696 = vpack.c.b16 %v564, %v560
    %v697 = vpack.c.b16 %v569, %v565
    %v698 = vpack.c.b16 %v570, %v566
    %v699 = vpack.c.b16 %v571, %v567
    %v700 = vpack.c.b16 %v572, %v568
    %829 = vmatprep.subr.bf16.mxu0 %v602
    %830 = vmatpush1.bf16.msra.mxu0 %v601
    %831 = vmatprep.subr.bf16.mxu0 %v598
    %832 = vmatpush1.bf16.msra.mxu0 %v597
    %833 = vmatprep.subr.bf16.mxu0 %v594
    %834 = vmatpush1.bf16.msra.mxu0 %v593
    %835 = vmatprep.subr.bf16.mxu0 %v590
    %836 = vmatpush1.bf16.msra.mxu0 %v589
    %837 = vmatprep.subr.bf16.mxu0 %v586
    %838 = vmatpush1.bf16.msra.mxu0 %v585
    %839 = vmatprep.subr.bf16.mxu0 %v582
    %840 = vmatpush1.bf16.msra.mxu0 %v581
    %841 = vmatprep.subr.bf16.mxu0 %v578
    %842 = vmatpush1.bf16.msra.mxu0 %v577
    %843 = vmatprep.subr.bf16.mxu0 %v574
    %844 = vmatpush1.bf16.msra.mxu0 %v573
    %845 = vmatprep.subr.bf16.mxu0 %v634
    %846 = vmatpush2.bf16.msra.mxu0 %v633
    %847 = vmatprep.subr.bf16.mxu0 %v630
    %848 = vmatpush2.bf16.msra.mxu0 %v629
    %849 = vmatprep.subr.bf16.mxu0 %v626
    %850 = vmatpush2.bf16.msra.mxu0 %v625
    %851 = vmatprep.subr.bf16.mxu0 %v622
    %852 = vmatpush2.bf16.msra.mxu0 %v621
    %853 = vmatprep.subr.bf16.mxu0 %v618
    %854 = vmatpush2.bf16.msra.mxu0 %v617
    %855 = vmatprep.subr.bf16.mxu0 %v614
    %856 = vmatpush2.bf16.msra.mxu0 %v613
    %857 = vmatprep.subr.bf16.mxu0 %v610
    %858 = vmatpush2.bf16.msra.mxu0 %v609
    %859 = vmatprep.subr.bf16.mxu0 %v606
    %860 = vmatpush2.bf16.msra.mxu0 %v605
    %861 = vmatprep.mubr.bf16.mxu0 %v58
    %862 = vmatmul.mubr.bf16.gmra.mxu0 %v57
    %v863 = vpop.f32.mrf.mxu0
    %v864 = vadd.f32 0.0, %v863
    %v865 = vpop.f32.mrf.mxu0
    %v866 = vadd.f32 0.0, %v865
    %v867 = vpop.f32.mrf.mxu0
    %v868 = vpop.f32.mrf.mxu0
    %869 = vdwg.mxu0
    %870 = vmatprep.subr.bf16.mxu0 %v666
    %871 = vmatpush1.bf16.msra.mxu0 %v665
    %872 = vmatprep.subr.bf16.mxu0 %v662
    %873 = vmatpush1.bf16.msra.mxu0 %v661
    %874 = vmatprep.subr.bf16.mxu0 %v658
    %875 = vmatpush1.bf16.msra.mxu0 %v657
    %876 = vmatprep.subr.bf16.mxu0 %v654
    %877 = vmatpush1.bf16.msra.mxu0 %v653
    %878 = vmatprep.subr.bf16.mxu0 %v650
    %879 = vmatpush1.bf16.msra.mxu0 %v649
    %880 = vmatprep.subr.bf16.mxu0 %v646
    %881 = vmatpush1.bf16.msra.mxu0 %v645
    %882 = vmatprep.subr.bf16.mxu0 %v642
    %883 = vmatpush1.bf16.msra.mxu0 %v641
    %884 = vmatprep.subr.bf16.mxu0 %v638
    %885 = vmatpush1.bf16.msra.mxu0 %v637
    %886 = vmatprep.subr.bf16.mxu0 %v698
    %887 = vmatpush2.bf16.msra.mxu0 %v697
    %888 = vmatprep.subr.bf16.mxu0 %v694
    %889 = vmatpush2.bf16.msra.mxu0 %v693
    %890 = vmatprep.subr.bf16.mxu0 %v690
    %891 = vmatpush2.bf16.msra.mxu0 %v689
    %892 = vmatprep.subr.bf16.mxu0 %v686
    %893 = vmatpush2.bf16.msra.mxu0 %v685
    %894 = vmatprep.subr.bf16.mxu0 %v682
    %895 = vmatpush2.bf16.msra.mxu0 %v681
    %896 = vmatprep.subr.bf16.mxu0 %v678
    %897 = vmatpush2.bf16.msra.mxu0 %v677
    %898 = vmatprep.subr.bf16.mxu0 %v674
    %899 = vmatpush2.bf16.msra.mxu0 %v673
    %900 = vmatprep.subr.bf16.mxu0 %v670
    %901 = vmatpush2.bf16.msra.mxu0 %v669
    %902 = vmatprep.mubr.bf16.mxu0 %v60
    %903 = vmatmul.mubr.bf16.gmra.mxu0 %v59
    %v904 = vpop.f32.mrf.mxu0
    %v905 = vadd.f32 %v864, %v904
    %v906 = vpop.f32.mrf.mxu0
    %v907 = vadd.f32 %v866, %v906
    %v908 = vpop.f32.mrf.mxu0
    %v909 = vpop.f32.mrf.mxu0
    %910 = vdwg.mxu0
    %911 = vmatprep.subr.bf16.mxu0 %v604
    %912 = vmatpush1.bf16.msra.mxu0 %v603
    %913 = vmatprep.subr.bf16.mxu0 %v600
    %914 = vmatpush1.bf16.msra.mxu0 %v599
    %915 = vmatprep.subr.bf16.mxu0 %v596
    %916 = vmatpush1.bf16.msra.mxu0 %v595
    %917 = vmatprep.subr.bf16.mxu0 %v592
    %918 = vmatpush1.bf16.msra.mxu0 %v591
    %919 = vmatprep.subr.bf16.mxu0 %v588
    %920 = vmatpush1.bf16.msra.mxu0 %v587
    %921 = vmatprep.subr.bf16.mxu0 %v584
    %922 = vmatpush1.bf16.msra.mxu0 %v583
    %923 = vmatprep.subr.bf16.mxu0 %v580
    %924 = vmatpush1.bf16.msra.mxu0 %v579
    %925 = vmatprep.subr.bf16.mxu0 %v576
    %926 = vmatpush1.bf16.msra.mxu0 %v575
    %927 = vmatprep.subr.bf16.mxu0 %v636
    %928 = vmatpush2.bf16.msra.mxu0 %v635
    %929 = vmatprep.subr.bf16.mxu0 %v632
    %930 = vmatpush2.bf16.msra.mxu0 %v631
    %931 = vmatprep.subr.bf16.mxu0 %v628
    %932 = vmatpush2.bf16.msra.mxu0 %v627
    %933 = vmatprep.subr.bf16.mxu0 %v624
    %934 = vmatpush2.bf16.msra.mxu0 %v623
    %935 = vmatprep.subr.bf16.mxu0 %v620
    %936 = vmatpush2.bf16.msra.mxu0 %v619
    %937 = vmatprep.subr.bf16.mxu0 %v616
    %938 = vmatpush2.bf16.msra.mxu0 %v615
    %939 = vmatprep.subr.bf16.mxu0 %v612
    %940 = vmatpush2.bf16.msra.mxu0 %v611
    %941 = vmatprep.subr.bf16.mxu0 %v608
    %942 = vmatpush2.bf16.msra.mxu0 %v607
    %943 = vmatprep.mubr.bf16.mxu0 %v58
    %944 = vmatmul.mubr.bf16.gmra.mxu0 %v57
    %v945 = vpop.f32.mrf.mxu0
    %v946 = vadd.f32 0.0, %v945
    %v947 = vpop.f32.mrf.mxu0
    %v948 = vadd.f32 0.0, %v947
    %v949 = vpop.f32.mrf.mxu0
    %v950 = vpop.f32.mrf.mxu0
    %951 = vdwg.mxu0
    %952 = vmatprep.subr.bf16.mxu0 %v668
    %953 = vmatpush1.bf16.msra.mxu0 %v667
    %954 = vmatprep.subr.bf16.mxu0 %v664
    %955 = vmatpush1.bf16.msra.mxu0 %v663
    %956 = vmatprep.subr.bf16.mxu0 %v660
    %957 = vmatpush1.bf16.msra.mxu0 %v659
    %958 = vmatprep.subr.bf16.mxu0 %v656
    %959 = vmatpush1.bf16.msra.mxu0 %v655
    %960 = vmatprep.subr.bf16.mxu0 %v652
    %961 = vmatpush1.bf16.msra.mxu0 %v651
    %962 = vmatprep.subr.bf16.mxu0 %v648
    %963 = vmatpush1.bf16.msra.mxu0 %v647
    %964 = vmatprep.subr.bf16.mxu0 %v644
    %965 = vmatpush1.bf16.msra.mxu0 %v643
    %966 = vmatprep.subr.bf16.mxu0 %v640
    %967 = vmatpush1.bf16.msra.mxu0 %v639
    %968 = vmatprep.subr.bf16.mxu0 %v700
    %969 = vmatpush2.bf16.msra.mxu0 %v699
    %970 = vmatprep.subr.bf16.mxu0 %v696
    %971 = vmatpush2.bf16.msra.mxu0 %v695
    %972 = vmatprep.subr.bf16.mxu0 %v692
    %973 = vmatpush2.bf16.msra.mxu0 %v691
    %974 = vmatprep.subr.bf16.mxu0 %v688
    %975 = vmatpush2.bf16.msra.mxu0 %v687
    %976 = vmatprep.subr.bf16.mxu0 %v684
    %977 = vmatpush2.bf16.msra.mxu0 %v683
    %978 = vmatprep.subr.bf16.mxu0 %v680
    %979 = vmatpush2.bf16.msra.mxu0 %v679
    %980 = vmatprep.subr.bf16.mxu0 %v676
    %981 = vmatpush2.bf16.msra.mxu0 %v675
    %982 = vmatprep.subr.bf16.mxu0 %v672
    %983 = vmatpush2.bf16.msra.mxu0 %v671
    %984 = vmatprep.mubr.bf16.mxu0 %v60
    %985 = vmatmul.mubr.bf16.gmra.mxu0 %v59
    %v986 = vpop.f32.mrf.mxu0
    %v987 = vadd.f32 %v946, %v986
    %v988 = vpop.f32.mrf.mxu0
    %v989 = vadd.f32 %v948, %v988
    %v990 = vpop.f32.mrf.mxu0
    %v991 = vpop.f32.mrf.mxu0
    %992 = vdwg.mxu0
    %v993 = vld [vmem:[#allocation7] ss:$8 sm:$0xf]
    %s994 = scalar_lea.vmem [#allocation7], 1
    %v995 = vld [vmem:[%s994] ss:$8 sm:$0xf]
    %v996 = vrot.slane %v905, 4
    %v997 = vadd.f32 %v905, %v996
    %v998 = vrot.slane %v997, 2
    %v999 = vadd.f32 %v997, %v998
    %v1000 = vrot.slane %v999, 1
    %v1001 = vadd.f32 %v999, %v1000
    %v1002 = vrot.slane %v907, 4
    %v1003 = vadd.f32 %v907, %v1002
    %v1004 = vrot.slane %v1003, 2
    %v1005 = vadd.f32 %v1003, %v1004
    %v1006 = vrot.slane %v1005, 1
    %v1007 = vadd.f32 %v1005, %v1006
    %v1008 = vrot.slane %v987, 4
    %v1009 = vadd.f32 %v987, %v1008
    %v1010 = vrot.slane %v1009, 2
    %v1011 = vadd.f32 %v1009, %v1010
    %v1012 = vrot.slane %v1011, 1
    %v1013 = vadd.f32 %v1011, %v1012
    %v1014 = vrot.slane %v989, 4
    %v1015 = vadd.f32 %v989, %v1014
    %v1016 = vrot.slane %v1015, 2
    %v1017 = vadd.f32 %v1015, %v1016
    %v1018 = vrot.slane %v1017, 1
    %v1019 = vadd.f32 %v1017, %v1018
    %v1020 = vrcp.pop 8.0
    %v1021 = vmul.f32 %v1001, %v1020
    %v1022 = vmul.f32 %v1007, %v1020
    %v1023 = vmul.f32 %v1013, %v1020
    %v1024 = vmul.f32 %v1019, %v1020
    %v1025 = vsub.f32 %v905, %v1021
    %v1026 = vsub.f32 %v907, %v1022
    %v1027 = vsub.f32 %v987, %v1023
    %v1028 = vsub.f32 %v989, %v1024
    %v1029 = vmul.f32 %v1025, %v1025
    %v1030 = vmul.f32 %v1026, %v1026
    %v1031 = vmul.f32 %v1027, %v1027
    %v1032 = vmul.f32 %v1028, %v1028
    %v1033 = vrot.slane %v1029, 4
    %v1034 = vadd.f32 %v1029, %v1033
    %v1035 = vrot.slane %v1034, 2
    %v1036 = vadd.f32 %v1034, %v1035
    %v1037 = vrot.slane %v1036, 1
    %v1038 = vadd.f32 %v1036, %v1037
    %v1039 = vrot.slane %v1030, 4
    %v1040 = vadd.f32 %v1030, %v1039
    %v1041 = vrot.slane %v1040, 2
    %v1042 = vadd.f32 %v1040, %v1041
    %v1043 = vrot.slane %v1042, 1
    %v1044 = vadd.f32 %v1042, %v1043
    %v1045 = vrot.slane %v1031, 4
    %v1046 = vadd.f32 %v1031, %v1045
    %v1047 = vrot.slane %v1046, 2
    %v1048 = vadd.f32 %v1046, %v1047
    %v1049 = vrot.slane %v1048, 1
    %v1050 = vadd.f32 %v1048, %v1049
    %v1051 = vrot.slane %v1032, 4
    %v1052 = vadd.f32 %v1032, %v1051
    %v1053 = vrot.slane %v1052, 2
    %v1054 = vadd.f32 %v1052, %v1053
    %v1055 = vrot.slane %v1054, 1
    %v1056 = vadd.f32 %v1054, %v1055
    %v1057 = vmul.f32 %v1038, %v1020
    %v1058 = vmul.f32 %v1044, %v1020
    %v1059 = vmul.f32 %v1050, %v1020
    %v1060 = vmul.f32 %v1056, %v1020
    %v1061 = vadd.f32 %v1057, 1e-05
    %v1062 = vadd.f32 %v1058, 1e-05
    %v1063 = vadd.f32 %v1059, 1e-05
    %v1064 = vadd.f32 %v1060, 1e-05
    %v1065 = vrsqrt.pop %v1061
    %v1066 = vrsqrt.pop %v1062
    %v1067 = vrsqrt.pop %v1063
    %v1068 = vrsqrt.pop %v1064
    %v1069 = vmul.f32 %v1025, %v1065
    %v1070 = vmul.f32 %v1026, %v1066
    %v1071 = vmul.f32 %v1027, %v1067
    %v1072 = vmul.f32 %v1028, %v1068
    %v1074 = vlaneseq
    %v1075 = vshrl.u32 %v1074, 7
    %v1076 = vsub.s32 0, %v1075
    %v1077 = vrot.slane %v993, %v1076
    %v1078 = vlaneseq
    %v1079 = vshrl.u32 %v1078, 7
    %v1080 = vsub.s32 1, %v1079
    %v1081 = vrot.slane %v993, %v1080
    %v1082 = vlaneseq
    %v1083 = vshrl.u32 %v1082, 7
    %v1084 = vsub.s32 2, %v1083
    %v1085 = vrot.slane %v993, %v1084
    %v1086 = vlaneseq
    %v1087 = vshrl.u32 %v1086, 7
    %v1088 = vsub.s32 3, %v1087
    %v1089 = vrot.slane %v993, %v1088
    %v1094 = vmul.f32 %v1069, %v1077
    %v1095 = vmul.f32 %v1070, %v1081
    %v1096 = vmul.f32 %v1071, %v1085
    %v1097 = vmul.f32 %v1072, %v1089
    %v1099 = vlaneseq
    %v1100 = vshrl.u32 %v1099, 7
    %v1101 = vsub.s32 0, %v1100
    %v1102 = vrot.slane %v995, %v1101
    %v1103 = vlaneseq
    %v1104 = vshrl.u32 %v1103, 7
    %v1105 = vsub.s32 1, %v1104
    %v1106 = vrot.slane %v995, %v1105
    %v1107 = vlaneseq
    %v1108 = vshrl.u32 %v1107, 7
    %v1109 = vsub.s32 2, %v1108
    %v1110 = vrot.slane %v995, %v1109
    %v1111 = vlaneseq
    %v1112 = vshrl.u32 %v1111, 7
    %v1113 = vsub.s32 3, %v1112
    %v1114 = vrot.slane %v995, %v1113
    %v1119 = vadd.f32 %v1094, %v1102
    %v1120 = vadd.f32 %v1095, %v1106
    %v1121 = vadd.f32 %v1096, %v1110
    %v1122 = vadd.f32 %v1097, %v1114
    %vm1123 = vcmp.ge.f32.partialorder %v1119, 0.0
    %vm1124 = vcmp.ge.f32.partialorder %v1120, 0.0
    %vm1125 = vcmp.ge.f32.partialorder %v1121, 0.0
    %vm1126 = vcmp.ge.f32.partialorder %v1122, 0.0
    %v1127 = vmul.f32 %v1119, 0.2
    %v1128 = vmul.f32 %v1120, 0.2
    %v1129 = vmul.f32 %v1121, 0.2
    %v1130 = vmul.f32 %v1122, 0.2
    %v1131 = vsel %vm1123, %v1119, %v1127
    %v1132 = vsel %vm1124, %v1120, %v1128
    %v1133 = vsel %vm1125, %v1121, %v1129
    %v1134 = vsel %vm1126, %v1122, %v1130
    %v1135 = vpack.c.bf16 %v1131, %v1131
    %v1136 = vpack.c.bf16 %v1132, %v1132
    %v1137 = vpack.c.bf16 %v1133, %v1133
    %v1138 = vpack.c.bf16 %v1134, %v1134
    %v1139 = vld [vmem:[#allocation5 + $0x10] sm:$0xff]
    %v1140 = vld [vmem:[#allocation5 + $0x18] sm:$0xff]
    %v1141 = vld [vmem:[#allocation5 + $0x34] sm:$0xff]
    %v1142 = vld [vmem:[#allocation5 + $0x3c] sm:$0xff]
    %v1143 = vld [vmem:[#allocation5 + $0x58] sm:$0xff]
    %v1144 = vld [vmem:[#allocation5 + $0x60] sm:$0xff]
    %v1145 = vld [vmem:[#allocation5 + $0x7c] sm:$0xff]
    %v1146 = vld [vmem:[#allocation5 + $0x84] sm:$0xff]
    %v1147 = vld [vmem:[#allocation5 + $0xa0] sm:$0xff]
    %v1148 = vld [vmem:[#allocation5 + $0xa8] sm:$0xff]
    %v1149 = vld [vmem:[#allocation5 + $0xc4] sm:$0xff]
    %v1150 = vld [vmem:[#allocation5 + $0xcc] sm:$0xff]
    %v1151 = vld [vmem:[#allocation5 + $0xe8] sm:$0xff]
    %v1152 = vld [vmem:[#allocation5 + $0xf0] sm:$0xff]
    %v1153 = vld [vmem:[#allocation5 + $0x10c] sm:$0xff]
    %v1154 = vld [vmem:[#allocation5 + $0x114] sm:$0xff]
    %v1155 = vld [vmem:[#allocation5 + $0x130] sm:$0xff]
    %v1156 = vld [vmem:[#allocation5 + $0x138] sm:$0xff]
    %v1157 = vld [vmem:[#allocation5 + $0x154] sm:$0xff]
    %v1158 = vld [vmem:[#allocation5 + $0x15c] sm:$0xff]
    %v1159 = vld [vmem:[#allocation5 + $0x178] sm:$0xff]
    %v1160 = vld [vmem:[#allocation5 + $0x180] sm:$0xff]
    %v1161 = vld [vmem:[#allocation5 + $0x19c] sm:$0xff]
    %v1162 = vld [vmem:[#allocation5 + $0x1a4] sm:$0xff]
    %v1163 = vld [vmem:[#allocation5 + $0x1c0] sm:$0xff]
    %v1164 = vld [vmem:[#allocation5 + $0x1c8] sm:$0xff]
    %v1165 = vld [vmem:[#allocation5 + $0x1e4] sm:$0xff]
    %v1166 = vld [vmem:[#allocation5 + $0x1ec] sm:$0xff]
    %v1167 = vld [vmem:[#allocation5 + $0x208] sm:$0xff]
    %v1168 = vld [vmem:[#allocation5 + $0x210] sm:$0xff]
    %v1169 = vld [vmem:[#allocation5 + $0x22c] sm:$0xff]
    %v1170 = vld [vmem:[#allocation5 + $0x234] sm:$0xff]
    %v1171 = vld [vmem:[#allocation5 + $0x250] sm:$0xff]
    %v1172 = vld [vmem:[#allocation5 + $0x258] sm:$0xff]
    %v1173 = vld [vmem:[#allocation5 + $0x274] sm:$0xff]
    %v1174 = vld [vmem:[#allocation5 + $0x27c] sm:$0xff]
    %v1175 = vld [vmem:[#allocation5 + $0x298] sm:$0xff]
    %v1176 = vld [vmem:[#allocation5 + $0x2a0] sm:$0xff]
    %v1177 = vld [vmem:[#allocation5 + $0x2bc] sm:$0xff]
    %v1178 = vld [vmem:[#allocation5 + $0x2c4] sm:$0xff]
    %v1179 = vld [vmem:[#allocation5 + $0x2e0] sm:$0xff]
    %v1180 = vld [vmem:[#allocation5 + $0x2e8] sm:$0xff]
    %v1181 = vld [vmem:[#allocation5 + $0x304] sm:$0xff]
    %v1182 = vld [vmem:[#allocation5 + $0x30c] sm:$0xff]
    %v1183 = vld [vmem:[#allocation5 + $0x328] sm:$0xff]
    %v1184 = vld [vmem:[#allocation5 + $0x330] sm:$0xff]
    %v1185 = vld [vmem:[#allocation5 + $0x34c] sm:$0xff]
    %v1186 = vld [vmem:[#allocation5 + $0x354] sm:$0xff]
    %v1187 = vld [vmem:[#allocation5 + $0x370] sm:$0xff]
    %v1188 = vld [vmem:[#allocation5 + $0x378] sm:$0xff]
    %v1189 = vld [vmem:[#allocation5 + $0x394] sm:$0xff]
    %v1190 = vld [vmem:[#allocation5 + $0x39c] sm:$0xff]
    %v1191 = vld [vmem:[#allocation5 + $0x3b8] sm:$0xff]
    %v1192 = vld [vmem:[#allocation5 + $0x3c0] sm:$0xff]
    %v1193 = vld [vmem:[#allocation5 + $0x3dc] sm:$0xff]
    %v1194 = vld [vmem:[#allocation5 + $0x3e4] sm:$0xff]
    %v1195 = vld [vmem:[#allocation5 + $0x400] sm:$0xff]
    %v1196 = vld [vmem:[#allocation5 + $0x408] sm:$0xff]
    %v1197 = vld [vmem:[#allocation5 + $0x424] sm:$0xff]
    %v1198 = vld [vmem:[#allocation5 + $0x42c] sm:$0xff]
    %v1199 = vld [vmem:[#allocation5 + $0x448] sm:$0xff]
    %v1200 = vld [vmem:[#allocation5 + $0x450] sm:$0xff]
    %v1201 = vld [vmem:[#allocation5 + $0x46c] sm:$0xff]
    %v1202 = vld [vmem:[#allocation5 + $0x474] sm:$0xff]
    %v1203 = vld [vmem:[#allocation5 + $0x490] sm:$0xff]
    %v1204 = vld [vmem:[#allocation5 + $0x498] sm:$0xff]
    %v1205 = vld [vmem:[#allocation5 + $0x4b4] sm:$0xff]
    %v1206 = vld [vmem:[#allocation5 + $0x4bc] sm:$0xff]
    %v1207 = vld [vmem:[#allocation5 + $0x4d8] sm:$0xff]
    %v1208 = vld [vmem:[#allocation5 + $0x4e0] sm:$0xff]
    %v1209 = vld [vmem:[#allocation5 + $0x4fc] sm:$0xff]
    %v1210 = vld [vmem:[#allocation5 + $0x504] sm:$0xff]
    %v1211 = vld [vmem:[#allocation5 + $0x520] sm:$0xff]
    %v1212 = vld [vmem:[#allocation5 + $0x528] sm:$0xff]
    %v1213 = vld [vmem:[#allocation5 + $0x544] sm:$0xff]
    %v1214 = vld [vmem:[#allocation5 + $0x54c] sm:$0xff]
    %v1215 = vld [vmem:[#allocation5 + $0x568] sm:$0xff]
    %v1216 = vld [vmem:[#allocation5 + $0x570] sm:$0xff]
    %v1217 = vld [vmem:[#allocation5 + $0x58c] sm:$0xff]
    %v1218 = vld [vmem:[#allocation5 + $0x594] sm:$0xff]
    %v1219 = vld [vmem:[#allocation5 + $0x5b0] sm:$0xff]
    %v1220 = vld [vmem:[#allocation5 + $0x5b8] sm:$0xff]
    %v1221 = vld [vmem:[#allocation5 + $0x5d4] sm:$0xff]
    %v1222 = vld [vmem:[#allocation5 + $0x5dc] sm:$0xff]
    %v1223 = vld [vmem:[#allocation5 + $0x5f8] sm:$0xff]
    %v1224 = vld [vmem:[#allocation5 + $0x600] sm:$0xff]
    %v1225 = vld [vmem:[#allocation5 + $0x61c] sm:$0xff]
    %v1226 = vld [vmem:[#allocation5 + $0x624] sm:$0xff]
    %v1227 = vld [vmem:[#allocation5 + $0x640] sm:$0xff]
    %v1228 = vld [vmem:[#allocation5 + $0x648] sm:$0xff]
    %v1229 = vld [vmem:[#allocation5 + $0x664] sm:$0xff]
    %v1230 = vld [vmem:[#allocation5 + $0x66c] sm:$0xff]
    %v1231 = vld [vmem:[#allocation5 + $0x688] sm:$0xff]
    %v1232 = vld [vmem:[#allocation5 + $0x690] sm:$0xff]
    %v1233 = vld [vmem:[#allocation5 + $0x6ac] sm:$0xff]
    %v1234 = vld [vmem:[#allocation5 + $0x6b4] sm:$0xff]
    %v1235 = vld [vmem:[#allocation5 + $0x6d0] sm:$0xff]
    %v1236 = vld [vmem:[#allocation5 + $0x6d8] sm:$0xff]
    %v1237 = vld [vmem:[#allocation5 + $0x6f4] sm:$0xff]
    %v1238 = vld [vmem:[#allocation5 + $0x6fc] sm:$0xff]
    %v1239 = vld [vmem:[#allocation5 + $0x718] sm:$0xff]
    %v1240 = vld [vmem:[#allocation5 + $0x720] sm:$0xff]
    %v1241 = vld [vmem:[#allocation5 + $0x73c] sm:$0xff]
    %v1242 = vld [vmem:[#allocation5 + $0x744] sm:$0xff]
    %v1243 = vld [vmem:[#allocation5 + $0x760] sm:$0xff]
    %v1244 = vld [vmem:[#allocation5 + $0x768] sm:$0xff]
    %v1245 = vld [vmem:[#allocation5 + $0x784] sm:$0xff]
    %v1246 = vld [vmem:[#allocation5 + $0x78c] sm:$0xff]
    %v1247 = vld [vmem:[#allocation5 + $0x7a8] sm:$0xff]
    %v1248 = vld [vmem:[#allocation5 + $0x7b0] sm:$0xff]
    %v1249 = vld [vmem:[#allocation5 + $0x7cc] sm:$0xff]
    %v1250 = vld [vmem:[#allocation5 + $0x7d4] sm:$0xff]
    %v1251 = vld [vmem:[#allocation5 + $0x7f0] sm:$0xff]
    %v1252 = vld [vmem:[#allocation5 + $0x7f8] sm:$0xff]
    %v1253 = vld [vmem:[#allocation5 + $0x814] sm:$0xff]
    %v1254 = vld [vmem:[#allocation5 + $0x81c] sm:$0xff]
    %v1255 = vld [vmem:[#allocation5 + $0x838] sm:$0xff]
    %v1256 = vld [vmem:[#allocation5 + $0x840] sm:$0xff]
    %v1257 = vld [vmem:[#allocation5 + $0x85c] sm:$0xff]
    %v1258 = vld [vmem:[#allocation5 + $0x864] sm:$0xff]
    %v1259 = vld [vmem:[#allocation5 + $0x880] sm:$0xff]
    %v1260 = vld [vmem:[#allocation5 + $0x888] sm:$0xff]
    %v1261 = vld [vmem:[#allocation5 + $0x8a4] sm:$0xff]
    %v1262 = vld [vmem:[#allocation5 + $0x8ac] sm:$0xff]
    %v1263 = vld [vmem:[#allocation5 + $0x8c8] sm:$0xff]
    %v1264 = vld [vmem:[#allocation5 + $0x8d0] sm:$0xff]
    %v1265 = vld [vmem:[#allocation5 + $0x8ec] sm:$0xff]
    %v1266 = vld [vmem:[#allocation5 + $0x8f4] sm:$0xff]
    %v1395 = vunpack.c.l.b16 %v1139
    %v1396 = vunpack.c.h.b16 %v1139
    %v1397 = vunpack.c.l.b16 %v1140
    %v1398 = vunpack.c.h.b16 %v1140
    %v1399 = vunpack.c.l.b16 %v1141
    %v1400 = vunpack.c.h.b16 %v1141
    %v1401 = vunpack.c.l.b16 %v1142
    %v1402 = vunpack.c.h.b16 %v1142
    %v1403 = vunpack.c.l.b16 %v1143
    %v1404 = vunpack.c.h.b16 %v1143
    %v1405 = vunpack.c.l.b16 %v1144
    %v1406 = vunpack.c.h.b16 %v1144
    %v1407 = vunpack.c.l.b16 %v1145
    %v1408 = vunpack.c.h.b16 %v1145
    %v1409 = vunpack.c.l.b16 %v1146
    %v1410 = vunpack.c.h.b16 %v1146
    %v1411 = vunpack.c.l.b16 %v1147
    %v1412 = vunpack.c.h.b16 %v1147
    %v1413 = vunpack.c.l.b16 %v1148
    %v1414 = vunpack.c.h.b16 %v1148
    %v1415 = vunpack.c.l.b16 %v1149
    %v1416 = vunpack.c.h.b16 %v1149
    %v1417 = vunpack.c.l.b16 %v1150
    %v1418 = vunpack.c.h.b16 %v1150
    %v1419 = vunpack.c.l.b16 %v1151
    %v1420 = vunpack.c.h.b16 %v1151
    %v1421 = vunpack.c.l.b16 %v1152
    %v1422 = vunpack.c.h.b16 %v1152
    %v1423 = vunpack.c.l.b16 %v1153
    %v1424 = vunpack.c.h.b16 %v1153
    %v1425 = vunpack.c.l.b16 %v1154
    %v1426 = vunpack.c.h.b16 %v1154
    %v1427 = vunpack.c.l.b16 %v1155
    %v1428 = vunpack.c.h.b16 %v1155
    %v1429 = vunpack.c.l.b16 %v1156
    %v1430 = vunpack.c.h.b16 %v1156
    %v1431 = vunpack.c.l.b16 %v1157
    %v1432 = vunpack.c.h.b16 %v1157
    %v1433 = vunpack.c.l.b16 %v1158
    %v1434 = vunpack.c.h.b16 %v1158
    %v1435 = vunpack.c.l.b16 %v1159
    %v1436 = vunpack.c.h.b16 %v1159
    %v1437 = vunpack.c.l.b16 %v1160
    %v1438 = vunpack.c.h.b16 %v1160
    %v1439 = vunpack.c.l.b16 %v1161
    %v1440 = vunpack.c.h.b16 %v1161
    %v1441 = vunpack.c.l.b16 %v1162
    %v1442 = vunpack.c.h.b16 %v1162
    %v1443 = vunpack.c.l.b16 %v1163
    %v1444 = vunpack.c.h.b16 %v1163
    %v1445 = vunpack.c.l.b16 %v1164
    %v1446 = vunpack.c.h.b16 %v1164
    %v1447 = vunpack.c.l.b16 %v1165
    %v1448 = vunpack.c.h.b16 %v1165
    %v1449 = vunpack.c.l.b16 %v1166
    %v1450 = vunpack.c.h.b16 %v1166
    %v1451 = vunpack.c.l.b16 %v1167
    %v1452 = vunpack.c.h.b16 %v1167
    %v1453 = vunpack.c.l.b16 %v1168
    %v1454 = vunpack.c.h.b16 %v1168
    %v1455 = vunpack.c.l.b16 %v1169
    %v1456 = vunpack.c.h.b16 %v1169
    %v1457 = vunpack.c.l.b16 %v1170
    %v1458 = vunpack.c.h.b16 %v1170
    %v1459 = vunpack.c.l.b16 %v1171
    %v1460 = vunpack.c.h.b16 %v1171
    %v1461 = vunpack.c.l.b16 %v1172
    %v1462 = vunpack.c.h.b16 %v1172
    %v1463 = vunpack.c.l.b16 %v1173
    %v1464 = vunpack.c.h.b16 %v1173
    %v1465 = vunpack.c.l.b16 %v1174
    %v1466 = vunpack.c.h.b16 %v1174
    %v1467 = vunpack.c.l.b16 %v1175
    %v1468 = vunpack.c.h.b16 %v1175
    %v1469 = vunpack.c.l.b16 %v1176
    %v1470 = vunpack.c.h.b16 %v1176
    %v1471 = vunpack.c.l.b16 %v1177
    %v1472 = vunpack.c.h.b16 %v1177
    %v1473 = vunpack.c.l.b16 %v1178
    %v1474 = vunpack.c.h.b16 %v1178
    %v1475 = vunpack.c.l.b16 %v1179
    %v1476 = vunpack.c.h.b16 %v1179
    %v1477 = vunpack.c.l.b16 %v1180
    %v1478 = vunpack.c.h.b16 %v1180
    %v1479 = vunpack.c.l.b16 %v1181
    %v1480 = vunpack.c.h.b16 %v1181
    %v1481 = vunpack.c.l.b16 %v1182
    %v1482 = vunpack.c.h.b16 %v1182
    %v1483 = vunpack.c.l.b16 %v1183
    %v1484 = vunpack.c.h.b16 %v1183
    %v1485 = vunpack.c.l.b16 %v1184
    %v1486 = vunpack.c.h.b16 %v1184
    %v1487 = vunpack.c.l.b16 %v1185
    %v1488 = vunpack.c.h.b16 %v1185
    %v1489 = vunpack.c.l.b16 %v1186
    %v1490 = vunpack.c.h.b16 %v1186
    %v1491 = vunpack.c.l.b16 %v1187
    %v1492 = vunpack.c.h.b16 %v1187
    %v1493 = vunpack.c.l.b16 %v1188
    %v1494 = vunpack.c.h.b16 %v1188
    %v1495 = vunpack.c.l.b16 %v1189
    %v1496 = vunpack.c.h.b16 %v1189
    %v1497 = vunpack.c.l.b16 %v1190
    %v1498 = vunpack.c.h.b16 %v1190
    %v1499 = vunpack.c.l.b16 %v1191
    %v1500 = vunpack.c.h.b16 %v1191
    %v1501 = vunpack.c.l.b16 %v1192
    %v1502 = vunpack.c.h.b16 %v1192
    %v1503 = vunpack.c.l.b16 %v1193
    %v1504 = vunpack.c.h.b16 %v1193
    %v1505 = vunpack.c.l.b16 %v1194
    %v1506 = vunpack.c.h.b16 %v1194
    %v1507 = vunpack.c.l.b16 %v1195
    %v1508 = vunpack.c.h.b16 %v1195
    %v1509 = vunpack.c.l.b16 %v1196
    %v1510 = vunpack.c.h.b16 %v1196
    %v1511 = vunpack.c.l.b16 %v1197
    %v1512 = vunpack.c.h.b16 %v1197
    %v1513 = vunpack.c.l.b16 %v1198
    %v1514 = vunpack.c.h.b16 %v1198
    %v1515 = vunpack.c.l.b16 %v1199
    %v1516 = vunpack.c.h.b16 %v1199
    %v1517 = vunpack.c.l.b16 %v1200
    %v1518 = vunpack.c.h.b16 %v1200
    %v1519 = vunpack.c.l.b16 %v1201
    %v1520 = vunpack.c.h.b16 %v1201
    %v1521 = vunpack.c.l.b16 %v1202
    %v1522 = vunpack.c.h.b16 %v1202
    %v1523 = vunpack.c.l.b16 %v1203
    %v1524 = vunpack.c.h.b16 %v1203
    %v1525 = vunpack.c.l.b16 %v1204
    %v1526 = vunpack.c.h.b16 %v1204
    %v1527 = vunpack.c.l.b16 %v1205
    %v1528 = vunpack.c.h.b16 %v1205
    %v1529 = vunpack.c.l.b16 %v1206
    %v1530 = vunpack.c.h.b16 %v1206
    %v1531 = vunpack.c.l.b16 %v1207
    %v1532 = vunpack.c.h.b16 %v1207
    %v1533 = vunpack.c.l.b16 %v1208
    %v1534 = vunpack.c.h.b16 %v1208
    %v1535 = vunpack.c.l.b16 %v1209
    %v1536 = vunpack.c.h.b16 %v1209
    %v1537 = vunpack.c.l.b16 %v1210
    %v1538 = vunpack.c.h.b16 %v1210
    %v1539 = vunpack.c.l.b16 %v1211
    %v1540 = vunpack.c.h.b16 %v1211
    %v1541 = vunpack.c.l.b16 %v1212
    %v1542 = vunpack.c.h.b16 %v1212
    %v1543 = vunpack.c.l.b16 %v1213
    %v1544 = vunpack.c.h.b16 %v1213
    %v1545 = vunpack.c.l.b16 %v1214
    %v1546 = vunpack.c.h.b16 %v1214
    %v1547 = vunpack.c.l.b16 %v1215
    %v1548 = vunpack.c.h.b16 %v1215
    %v1549 = vunpack.c.l.b16 %v1216
    %v1550 = vunpack.c.h.b16 %v1216
    %v1551 = vunpack.c.l.b16 %v1217
    %v1552 = vunpack.c.h.b16 %v1217
    %v1553 = vunpack.c.l.b16 %v1218
    %v1554 = vunpack.c.h.b16 %v1218
    %v1555 = vunpack.c.l.b16 %v1219
    %v1556 = vunpack.c.h.b16 %v1219
    %v1557 = vunpack.c.l.b16 %v1220
    %v1558 = vunpack.c.h.b16 %v1220
    %v1559 = vunpack.c.l.b16 %v1221
    %v1560 = vunpack.c.h.b16 %v1221
    %v1561 = vunpack.c.l.b16 %v1222
    %v1562 = vunpack.c.h.b16 %v1222
    %v1563 = vunpack.c.l.b16 %v1223
    %v1564 = vunpack.c.h.b16 %v1223
    %v1565 = vunpack.c.l.b16 %v1224
    %v1566 = vunpack.c.h.b16 %v1224
    %v1567 = vunpack.c.l.b16 %v1225
    %v1568 = vunpack.c.h.b16 %v1225
    %v1569 = vunpack.c.l.b16 %v1226
    %v1570 = vunpack.c.h.b16 %v1226
    %v1571 = vunpack.c.l.b16 %v1227
    %v1572 = vunpack.c.h.b16 %v1227
    %v1573 = vunpack.c.l.b16 %v1228
    %v1574 = vunpack.c.h.b16 %v1228
    %v1575 = vunpack.c.l.b16 %v1229
    %v1576 = vunpack.c.h.b16 %v1229
    %v1577 = vunpack.c.l.b16 %v1230
    %v1578 = vunpack.c.h.b16 %v1230
    %v1579 = vunpack.c.l.b16 %v1231
    %v1580 = vunpack.c.h.b16 %v1231
    %v1581 = vunpack.c.l.b16 %v1232
    %v1582 = vunpack.c.h.b16 %v1232
    %v1583 = vunpack.c.l.b16 %v1233
    %v1584 = vunpack.c.h.b16 %v1233
    %v1585 = vunpack.c.l.b16 %v1234
    %v1586 = vunpack.c.h.b16 %v1234
    %v1587 = vunpack.c.l.b16 %v1235
    %v1588 = vunpack.c.h.b16 %v1235
    %v1589 = vunpack.c.l.b16 %v1236
    %v1590 = vunpack.c.h.b16 %v1236
    %v1591 = vunpack.c.l.b16 %v1237
    %v1592 = vunpack.c.h.b16 %v1237
    %v1593 = vunpack.c.l.b16 %v1238
    %v1594 = vunpack.c.h.b16 %v1238
    %v1595 = vunpack.c.l.b16 %v1239
    %v1596 = vunpack.c.h.b16 %v1239
    %v1597 = vunpack.c.l.b16 %v1240
    %v1598 = vunpack.c.h.b16 %v1240
    %v1599 = vunpack.c.l.b16 %v1241
    %v1600 = vunpack.c.h.b16 %v1241
    %v1601 = vunpack.c.l.b16 %v1242
    %v1602 = vunpack.c.h.b16 %v1242
    %v1603 = vunpack.c.l.b16 %v1243
    %v1604 = vunpack.c.h.b16 %v1243
    %v1605 = vunpack.c.l.b16 %v1244
    %v1606 = vunpack.c.h.b16 %v1244
    %v1607 = vunpack.c.l.b16 %v1245
    %v1608 = vunpack.c.h.b16 %v1245
    %v1609 = vunpack.c.l.b16 %v1246
    %v1610 = vunpack.c.h.b16 %v1246
    %v1611 = vunpack.c.l.b16 %v1247
    %v1612 = vunpack.c.h.b16 %v1247
    %v1613 = vunpack.c.l.b16 %v1248
    %v1614 = vunpack.c.h.b16 %v1248
    %v1615 = vunpack.c.l.b16 %v1249
    %v1616 = vunpack.c.h.b16 %v1249
    %v1617 = vunpack.c.l.b16 %v1250
    %v1618 = vunpack.c.h.b16 %v1250
    %v1619 = vunpack.c.l.b16 %v1251
    %v1620 = vunpack.c.h.b16 %v1251
    %v1621 = vunpack.c.l.b16 %v1252
    %v1622 = vunpack.c.h.b16 %v1252
    %v1623 = vunpack.c.l.b16 %v1253
    %v1624 = vunpack.c.h.b16 %v1253
    %v1625 = vunpack.c.l.b16 %v1254
    %v1626 = vunpack.c.h.b16 %v1254
    %v1627 = vunpack.c.l.b16 %v1255
    %v1628 = vunpack.c.h.b16 %v1255
    %v1629 = vunpack.c.l.b16 %v1256
    %v1630 = vunpack.c.h.b16 %v1256
    %v1631 = vunpack.c.l.b16 %v1257
    %v1632 = vunpack.c.h.b16 %v1257
    %v1633 = vunpack.c.l.b16 %v1258
    %v1634 = vunpack.c.h.b16 %v1258
    %v1635 = vunpack.c.l.b16 %v1259
    %v1636 = vunpack.c.h.b16 %v1259
    %v1637 = vunpack.c.l.b16 %v1260
    %v1638 = vunpack.c.h.b16 %v1260
    %v1639 = vunpack.c.l.b16 %v1261
    %v1640 = vunpack.c.h.b16 %v1261
    %v1641 = vunpack.c.l.b16 %v1262
    %v1642 = vunpack.c.h.b16 %v1262
    %v1643 = vunpack.c.l.b16 %v1263
    %v1644 = vunpack.c.h.b16 %v1263
    %v1645 = vunpack.c.l.b16 %v1264
    %v1646 = vunpack.c.h.b16 %v1264
    %v1647 = vunpack.c.l.b16 %v1265
    %v1648 = vunpack.c.h.b16 %v1265
    %v1649 = vunpack.c.l.b16 %v1266
    %v1650 = vunpack.c.h.b16 %v1266
    %v1651 = vpack.c.b16 %v1399, %v1395
    %v1652 = vpack.c.b16 %v1400, %v1396
    %v1653 = vpack.c.b16 %v1401, %v1397
    %v1654 = vpack.c.b16 %v1402, %v1398
    %v1655 = vpack.c.b16 %v1407, %v1403
    %v1656 = vpack.c.b16 %v1408, %v1404
    %v1657 = vpack.c.b16 %v1409, %v1405
    %v1658 = vpack.c.b16 %v1410, %v1406
    %v1659 = vpack.c.b16 %v1415, %v1411
    %v1660 = vpack.c.b16 %v1416, %v1412
    %v1661 = vpack.c.b16 %v1417, %v1413
    %v1662 = vpack.c.b16 %v1418, %v1414
    %v1663 = vpack.c.b16 %v1423, %v1419
    %v1664 = vpack.c.b16 %v1424, %v1420
    %v1665 = vpack.c.b16 %v1425, %v1421
    %v1666 = vpack.c.b16 %v1426, %v1422
    %v1667 = vpack.c.b16 %v1431, %v1427
    %v1668 = vpack.c.b16 %v1432, %v1428
    %v1669 = vpack.c.b16 %v1433, %v1429
    %v1670 = vpack.c.b16 %v1434, %v1430
    %v1671 = vpack.c.b16 %v1439, %v1435
    %v1672 = vpack.c.b16 %v1440, %v1436
    %v1673 = vpack.c.b16 %v1441, %v1437
    %v1674 = vpack.c.b16 %v1442, %v1438
    %v1675 = vpack.c.b16 %v1447, %v1443
    %v1676 = vpack.c.b16 %v1448, %v1444
    %v1677 = vpack.c.b16 %v1449, %v1445
    %v1678 = vpack.c.b16 %v1450, %v1446
    %v1679 = vpack.c.b16 %v1455, %v1451
    %v1680 = vpack.c.b16 %v1456, %v1452
    %v1681 = vpack.c.b16 %v1457, %v1453
    %v1682 = vpack.c.b16 %v1458, %v1454
    %v1683 = vpack.c.b16 %v1463, %v1459
    %v1684 = vpack.c.b16 %v1464, %v1460
    %v1685 = vpack.c.b16 %v1465, %v1461
    %v1686 = vpack.c.b16 %v1466, %v1462
    %v1687 = vpack.c.b16 %v1471, %v1467
    %v1688 = vpack.c.b16 %v1472, %v1468
    %v1689 = vpack.c.b16 %v1473, %v1469
    %v1690 = vpack.c.b16 %v1474, %v1470
    %v1691 = vpack.c.b16 %v1479, %v1475
    %v1692 = vpack.c.b16 %v1480, %v1476
    %v1693 = vpack.c.b16 %v1481, %v1477
    %v1694 = vpack.c.b16 %v1482, %v1478
    %v1695 = vpack.c.b16 %v1487, %v1483
    %v1696 = vpack.c.b16 %v1488, %v1484
    %v1697 = vpack.c.b16 %v1489, %v1485
    %v1698 = vpack.c.b16 %v1490, %v1486
    %v1699 = vpack.c.b16 %v1495, %v1491
    %v1700 = vpack.c.b16 %v1496, %v1492
    %v1701 = vpack.c.b16 %v1497, %v1493
    %v1702 = vpack.c.b16 %v1498, %v1494
    %v1703 = vpack.c.b16 %v1503, %v1499
    %v1704 = vpack.c.b16 %v1504, %v1500
    %v1705 = vpack.c.b16 %v1505, %v1501
    %v1706 = vpack.c.b16 %v1506, %v1502
    %v1707 = vpack.c.b16 %v1511, %v1507
    %v1708 = vpack.c.b16 %v1512, %v1508
    %v1709 = vpack.c.b16 %v1513, %v1509
    %v1710 = vpack.c.b16 %v1514, %v1510
    %v1711 = vpack.c.b16 %v1519, %v1515
    %v1712 = vpack.c.b16 %v1520, %v1516
    %v1713 = vpack.c.b16 %v1521, %v1517
    %v1714 = vpack.c.b16 %v1522, %v1518
    %v1715 = vpack.c.b16 %v1527, %v1523
    %v1716 = vpack.c.b16 %v1528, %v1524
    %v1717 = vpack.c.b16 %v1529, %v1525
    %v1718 = vpack.c.b16 %v1530, %v1526
    %v1719 = vpack.c.b16 %v1535, %v1531
    %v1720 = vpack.c.b16 %v1536, %v1532
    %v1721 = vpack.c.b16 %v1537, %v1533
    %v1722 = vpack.c.b16 %v1538, %v1534
    %v1723 = vpack.c.b16 %v1543, %v1539
    %v1724 = vpack.c.b16 %v1544, %v1540
    %v1725 = vpack.c.b16 %v1545, %v1541
    %v1726 = vpack.c.b16 %v1546, %v1542
    %v1727 = vpack.c.b16 %v1551, %v1547
    %v1728 = vpack.c.b16 %v1552, %v1548
    %v1729 = vpack.c.b16 %v1553, %v1549
    %v1730 = vpack.c.b16 %v1554, %v1550
    %v1731 = vpack.c.b16 %v1559, %v1555
    %v1732 = vpack.c.b16 %v1560, %v1556
    %v1733 = vpack.c.b16 %v1561, %v1557
    %v1734 = vpack.c.b16 %v1562, %v1558
    %v1735 = vpack.c.b16 %v1567, %v1563
    %v1736 = vpack.c.b16 %v1568, %v1564
    %v1737 = vpack.c.b16 %v1569, %v1565
    %v1738 = vpack.c.b16 %v1570, %v1566
    %v1739 = vpack.c.b16 %v1575, %v1571
    %v1740 = vpack.c.b16 %v1576, %v1572
    %v1741 = vpack.c.b16 %v1577, %v1573
    %v1742 = vpack.c.b16 %v1578, %v1574
    %v1743 = vpack.c.b16 %v1583, %v1579
    %v1744 = vpack.c.b16 %v1584, %v1580
    %v1745 = vpack.c.b16 %v1585, %v1581
    %v1746 = vpack.c.b16 %v1586, %v1582
    %v1747 = vpack.c.b16 %v1591, %v1587
    %v1748 = vpack.c.b16 %v1592, %v1588
    %v1749 = vpack.c.b16 %v1593, %v1589
    %v1750 = vpack.c.b16 %v1594, %v1590
    %v1751 = vpack.c.b16 %v1599, %v1595
    %v1752 = vpack.c.b16 %v1600, %v1596
    %v1753 = vpack.c.b16 %v1601, %v1597
    %v1754 = vpack.c.b16 %v1602, %v1598
    %v1755 = vpack.c.b16 %v1607, %v1603
    %v1756 = vpack.c.b16 %v1608, %v1604
    %v1757 = vpack.c.b16 %v1609, %v1605
    %v1758 = vpack.c.b16 %v1610, %v1606
    %v1759 = vpack.c.b16 %v1615, %v1611
    %v1760 = vpack.c.b16 %v1616, %v1612
    %v1761 = vpack.c.b16 %v1617, %v1613
    %v1762 = vpack.c.b16 %v1618, %v1614
    %v1763 = vpack.c.b16 %v1623, %v1619
    %v1764 = vpack.c.b16 %v1624, %v1620
    %v1765 = vpack.c.b16 %v1625, %v1621
    %v1766 = vpack.c.b16 %v1626, %v1622
    %v1767 = vpack.c.b16 %v1631, %v1627
    %v1768 = vpack.c.b16 %v1632, %v1628
    %v1769 = vpack.c.b16 %v1633, %v1629
    %v1770 = vpack.c.b16 %v1634, %v1630
    %v1771 = vpack.c.b16 %v1639, %v1635
    %v1772 = vpack.c.b16 %v1640, %v1636
    %v1773 = vpack.c.b16 %v1641, %v1637
    %v1774 = vpack.c.b16 %v1642, %v1638
    %v1775 = vpack.c.b16 %v1647, %v1643
    %v1776 = vpack.c.b16 %v1648, %v1644
    %v1777 = vpack.c.b16 %v1649, %v1645
    %v1778 = vpack.c.b16 %v1650, %v1646
    %1907 = vmatprep.subr.bf16.mxu0 %v1680
    %1908 = vmatpush1.bf16.msra.mxu0 %v1679
    %1909 = vmatprep.subr.bf16.mxu0 %v1676
    %1910 = vmatpush1.bf16.msra.mxu0 %v1675
    %1911 = vmatprep.subr.bf16.mxu0 %v1672
    %1912 = vmatpush1.bf16.msra.mxu0 %v1671
    %1913 = vmatprep.subr.bf16.mxu0 %v1668
    %1914 = vmatpush1.bf16.msra.mxu0 %v1667
    %1915 = vmatprep.subr.bf16.mxu0 %v1664
    %1916 = vmatpush1.bf16.msra.mxu0 %v1663
    %1917 = vmatprep.subr.bf16.mxu0 %v1660
    %1918 = vmatpush1.bf16.msra.mxu0 %v1659
    %1919 = vmatprep.subr.bf16.mxu0 %v1656
    %1920 = vmatpush1.bf16.msra.mxu0 %v1655
    %1921 = vmatprep.subr.bf16.mxu0 %v1652
    %1922 = vmatpush1.bf16.msra.mxu0 %v1651
    %1923 = vmatprep.subr.bf16.mxu0 %v1712
    %1924 = vmatpush2.bf16.msra.mxu0 %v1711
    %1925 = vmatprep.subr.bf16.mxu0 %v1708
    %1926 = vmatpush2.bf16.msra.mxu0 %v1707
    %1927 = vmatprep.subr.bf16.mxu0 %v1704
    %1928 = vmatpush2.bf16.msra.mxu0 %v1703
    %1929 = vmatprep.subr.bf16.mxu0 %v1700
    %1930 = vmatpush2.bf16.msra.mxu0 %v1699
    %1931 = vmatprep.subr.bf16.mxu0 %v1696
    %1932 = vmatpush2.bf16.msra.mxu0 %v1695
    %1933 = vmatprep.subr.bf16.mxu0 %v1692
    %1934 = vmatpush2.bf16.msra.mxu0 %v1691
    %1935 = vmatprep.subr.bf16.mxu0 %v1688
    %1936 = vmatpush2.bf16.msra.mxu0 %v1687
    %1937 = vmatprep.subr.bf16.mxu0 %v1684
    %1938 = vmatpush2.bf16.msra.mxu0 %v1683
    %1939 = vmatprep.mubr.bf16.mxu0 %v1136
    %1940 = vmatmul.mubr.bf16.gmra.mxu0 %v1135
    %v1941 = vpop.f32.mrf.mxu0
    %v1942 = vadd.f32 0.0, %v1941
    %v1943 = vpop.f32.mrf.mxu0
    %v1944 = vadd.f32 0.0, %v1943
    %v1945 = vpop.f32.mrf.mxu0
    %v1946 = vpop.f32.mrf.mxu0
    %1947 = vdwg.mxu0
    %1948 = vmatprep.subr.bf16.mxu0 %v1744
    %1949 = vmatpush1.bf16.msra.mxu0 %v1743
    %1950 = vmatprep.subr.bf16.mxu0 %v1740
    %1951 = vmatpush1.bf16.msra.mxu0 %v1739
    %1952 = vmatprep.subr.bf16.mxu0 %v1736
    %1953 = vmatpush1.bf16.msra.mxu0 %v1735
    %1954 = vmatprep.subr.bf16.mxu0 %v1732
    %1955 = vmatpush1.bf16.msra.mxu0 %v1731
    %1956 = vmatprep.subr.bf16.mxu0 %v1728
    %1957 = vmatpush1.bf16.msra.mxu0 %v1727
    %1958 = vmatprep.subr.bf16.mxu0 %v1724
    %1959 = vmatpush1.bf16.msra.mxu0 %v1723
    %1960 = vmatprep.subr.bf16.mxu0 %v1720
    %1961 = vmatpush1.bf16.msra.mxu0 %v1719
    %1962 = vmatprep.subr.bf16.mxu0 %v1716
    %1963 = vmatpush1.bf16.msra.mxu0 %v1715
    %1964 = vmatprep.subr.bf16.mxu0 %v1776
    %1965 = vmatpush2.bf16.msra.mxu0 %v1775
    %1966 = vmatprep.subr.bf16.mxu0 %v1772
    %1967 = vmatpush2.bf16.msra.mxu0 %v1771
    %1968 = vmatprep.subr.bf16.mxu0 %v1768
    %1969 = vmatpush2.bf16.msra.mxu0 %v1767
    %1970 = vmatprep.subr.bf16.mxu0 %v1764
    %1971 = vmatpush2.bf16.msra.mxu0 %v1763
    %1972 = vmatprep.subr.bf16.mxu0 %v1760
    %1973 = vmatpush2.bf16.msra.mxu0 %v1759
    %1974 = vmatprep.subr.bf16.mxu0 %v1756
    %1975 = vmatpush2.bf16.msra.mxu0 %v1755
    %1976 = vmatprep.subr.bf16.mxu0 %v1752
    %1977 = vmatpush2.bf16.msra.mxu0 %v1751
    %1978 = vmatprep.subr.bf16.mxu0 %v1748
    %1979 = vmatpush2.bf16.msra.mxu0 %v1747
    %1980 = vmatprep.mubr.bf16.mxu0 %v1138
    %1981 = vmatmul.mubr.bf16.gmra.mxu0 %v1137
    %v1982 = vpop.f32.mrf.mxu0
    %v1983 = vadd.f32 %v1942, %v1982
    %v1984 = vpop.f32.mrf.mxu0
    %v1985 = vadd.f32 %v1944, %v1984
    %v1986 = vpop.f32.mrf.mxu0
    %v1987 = vpop.f32.mrf.mxu0
    %1988 = vdwg.mxu0
    %1989 = vmatprep.subr.bf16.mxu0 %v1682
    %1990 = vmatpush1.bf16.msra.mxu0 %v1681
    %1991 = vmatprep.subr.bf16.mxu0 %v1678
    %1992 = vmatpush1.bf16.msra.mxu0 %v1677
    %1993 = vmatprep.subr.bf16.mxu0 %v1674
    %1994 = vmatpush1.bf16.msra.mxu0 %v1673
    %1995 = vmatprep.subr.bf16.mxu0 %v1670
    %1996 = vmatpush1.bf16.msra.mxu0 %v1669
    %1997 = vmatprep.subr.bf16.mxu0 %v1666
    %1998 = vmatpush1.bf16.msra.mxu0 %v1665
    %1999 = vmatprep.subr.bf16.mxu0 %v1662
    %2000 = vmatpush1.bf16.msra.mxu0 %v1661
    %2001 = vmatprep.subr.bf16.mxu0 %v1658
    %2002 = vmatpush1.bf16.msra.mxu0 %v1657
    %2003 = vmatprep.subr.bf16.mxu0 %v1654
    %2004 = vmatpush1.bf16.msra.mxu0 %v1653
    %2005 = vmatprep.subr.bf16.mxu0 %v1714
    %2006 = vmatpush2.bf16.msra.mxu0 %v1713
    %2007 = vmatprep.subr.bf16.mxu0 %v1710
    %2008 = vmatpush2.bf16.msra.mxu0 %v1709
    %2009 = vmatprep.subr.bf16.mxu0 %v1706
    %2010 = vmatpush2.bf16.msra.mxu0 %v1705
    %2011 = vmatprep.subr.bf16.mxu0 %v1702
    %2012 = vmatpush2.bf16.msra.mxu0 %v1701
    %2013 = vmatprep.subr.bf16.mxu0 %v1698
    %2014 = vmatpush2.bf16.msra.mxu0 %v1697
    %2015 = vmatprep.subr.bf16.mxu0 %v1694
    %2016 = vmatpush2.bf16.msra.mxu0 %v1693
    %2017 = vmatprep.subr.bf16.mxu0 %v1690
    %2018 = vmatpush2.bf16.msra.mxu0 %v1689
    %2019 = vmatprep.subr.bf16.mxu0 %v1686
    %2020 = vmatpush2.bf16.msra.mxu0 %v1685
    %2021 = vmatprep.mubr.bf16.mxu0 %v1136
    %2022 = vmatmul.mubr.bf16.gmra.mxu0 %v1135
    %v2023 = vpop.f32.mrf.mxu0
    %v2024 = vadd.f32 0.0, %v2023
    %v2025 = vpop.f32.mrf.mxu0
    %v2026 = vadd.f32 0.0, %v2025
    %v2027 = vpop.f32.mrf.mxu0
    %v2028 = vpop.f32.mrf.mxu0
    %2029 = vdwg.mxu0
    %2030 = vmatprep.subr.bf16.mxu0 %v1746
    %2031 = vmatpush1.bf16.msra.mxu0 %v1745
    %2032 = vmatprep.subr.bf16.mxu0 %v1742
    %2033 = vmatpush1.bf16.msra.mxu0 %v1741
    %2034 = vmatprep.subr.bf16.mxu0 %v1738
    %2035 = vmatpush1.bf16.msra.mxu0 %v1737
    %2036 = vmatprep.subr.bf16.mxu0 %v1734
    %2037 = vmatpush1.bf16.msra.mxu0 %v1733
    %2038 = vmatprep.subr.bf16.mxu0 %v1730
    %2039 = vmatpush1.bf16.msra.mxu0 %v1729
    %2040 = vmatprep.subr.bf16.mxu0 %v1726
    %2041 = vmatpush1.bf16.msra.mxu0 %v1725
    %2042 = vmatprep.subr.bf16.mxu0 %v1722
    %2043 = vmatpush1.bf16.msra.mxu0 %v1721
    %2044 = vmatprep.subr.bf16.mxu0 %v1718
    %2045 = vmatpush1.bf16.msra.mxu0 %v1717
    %2046 = vmatprep.subr.bf16.mxu0 %v1778
    %2047 = vmatpush2.bf16.msra.mxu0 %v1777
    %2048 = vmatprep.subr.bf16.mxu0 %v1774
    %2049 = vmatpush2.bf16.msra.mxu0 %v1773
    %2050 = vmatprep.subr.bf16.mxu0 %v1770
    %2051 = vmatpush2.bf16.msra.mxu0 %v1769
    %2052 = vmatprep.subr.bf16.mxu0 %v1766
    %2053 = vmatpush2.bf16.msra.mxu0 %v1765
    %2054 = vmatprep.subr.bf16.mxu0 %v1762
    %2055 = vmatpush2.bf16.msra.mxu0 %v1761
    %2056 = vmatprep.subr.bf16.mxu0 %v1758
    %2057 = vmatpush2.bf16.msra.mxu0 %v1757
    %2058 = vmatprep.subr.bf16.mxu0 %v1754
    %2059 = vmatpush2.bf16.msra.mxu0 %v1753
    %2060 = vmatprep.subr.bf16.mxu0 %v1750
    %2061 = vmatpush2.bf16.msra.mxu0 %v1749
    %2062 = vmatprep.mubr.bf16.mxu0 %v1138
    %2063 = vmatmul.mubr.bf16.gmra.mxu0 %v1137
    %v2064 = vpop.f32.mrf.mxu0
    %v2065 = vadd.f32 %v2024, %v2064
    %v2066 = vpop.f32.mrf.mxu0
    %v2067 = vadd.f32 %v2026, %v2066
    %v2068 = vpop.f32.mrf.mxu0
    %v2069 = vpop.f32.mrf.mxu0
    %2070 = vdwg.mxu0
    %s2071 = scalar_lea.vmem [#allocation7], 2
    %v2072 = vld [vmem:[%s2071] ss:$8 sm:$0xf]
    %s2073 = scalar_lea.vmem [#allocation7], 3
    %v2074 = vld [vmem:[%s2073] ss:$8 sm:$0xf]
    %v2075 = vrot.slane %v1983, 4
    %v2076 = vadd.f32 %v1983, %v2075
    %v2077 = vrot.slane %v2076, 2
    %v2078 = vadd.f32 %v2076, %v2077
    %v2079 = vrot.slane %v2078, 1
    %v2080 = vadd.f32 %v2078, %v2079
    %v2081 = vrot.slane %v1985, 4
    %v2082 = vadd.f32 %v1985, %v2081
    %v2083 = vrot.slane %v2082, 2
    %v2084 = vadd.f32 %v2082, %v2083
    %v2085 = vrot.slane %v2084, 1
    %v2086 = vadd.f32 %v2084, %v2085
    %v2087 = vrot.slane %v2065, 4
    %v2088 = vadd.f32 %v2065, %v2087
    %v2089 = vrot.slane %v2088, 2
    %v2090 = vadd.f32 %v2088, %v2089
    %v2091 = vrot.slane %v2090, 1
    %v2092 = vadd.f32 %v2090, %v2091
    %v2093 = vrot.slane %v2067, 4
    %v2094 = vadd.f32 %v2067, %v2093
    %v2095 = vrot.slane %v2094, 2
    %v2096 = vadd.f32 %v2094, %v2095
    %v2097 = vrot.slane %v2096, 1
    %v2098 = vadd.f32 %v2096, %v2097
    %v2099 = vmul.f32 %v2080, %v1020
    %v2100 = vmul.f32 %v2086, %v1020
    %v2101 = vmul.f32 %v2092, %v1020
    %v2102 = vmul.f32 %v2098, %v1020
    %v2103 = vsub.f32 %v1983, %v2099
    %v2104 = vsub.f32 %v1985, %v2100
    %v2105 = vsub.f32 %v2065, %v2101
    %v2106 = vsub.f32 %v2067, %v2102
    %v2107 = vmul.f32 %v2103, %v2103
    %v2108 = vmul.f32 %v2104, %v2104
    %v2109 = vmul.f32 %v2105, %v2105
    %v2110 = vmul.f32 %v2106, %v2106
    %v2111 = vrot.slane %v2107, 4
    %v2112 = vadd.f32 %v2107, %v2111
    %v2113 = vrot.slane %v2112, 2
    %v2114 = vadd.f32 %v2112, %v2113
    %v2115 = vrot.slane %v2114, 1
    %v2116 = vadd.f32 %v2114, %v2115
    %v2117 = vrot.slane %v2108, 4
    %v2118 = vadd.f32 %v2108, %v2117
    %v2119 = vrot.slane %v2118, 2
    %v2120 = vadd.f32 %v2118, %v2119
    %v2121 = vrot.slane %v2120, 1
    %v2122 = vadd.f32 %v2120, %v2121
    %v2123 = vrot.slane %v2109, 4
    %v2124 = vadd.f32 %v2109, %v2123
    %v2125 = vrot.slane %v2124, 2
    %v2126 = vadd.f32 %v2124, %v2125
    %v2127 = vrot.slane %v2126, 1
    %v2128 = vadd.f32 %v2126, %v2127
    %v2129 = vrot.slane %v2110, 4
    %v2130 = vadd.f32 %v2110, %v2129
    %v2131 = vrot.slane %v2130, 2
    %v2132 = vadd.f32 %v2130, %v2131
    %v2133 = vrot.slane %v2132, 1
    %v2134 = vadd.f32 %v2132, %v2133
    %v2135 = vmul.f32 %v2116, %v1020
    %v2136 = vmul.f32 %v2122, %v1020
    %v2137 = vmul.f32 %v2128, %v1020
    %v2138 = vmul.f32 %v2134, %v1020
    %v2139 = vadd.f32 %v2135, 1e-05
    %v2140 = vadd.f32 %v2136, 1e-05
    %v2141 = vadd.f32 %v2137, 1e-05
    %v2142 = vadd.f32 %v2138, 1e-05
    %v2143 = vrsqrt.pop %v2139
    %v2144 = vrsqrt.pop %v2140
    %v2145 = vrsqrt.pop %v2141
    %v2146 = vrsqrt.pop %v2142
    %v2147 = vmul.f32 %v2103, %v2143
    %v2148 = vmul.f32 %v2104, %v2144
    %v2149 = vmul.f32 %v2105, %v2145
    %v2150 = vmul.f32 %v2106, %v2146
    %v2152 = vlaneseq
    %v2153 = vshrl.u32 %v2152, 7
    %v2154 = vsub.s32 0, %v2153
    %v2155 = vrot.slane %v2072, %v2154
    %v2156 = vlaneseq
    %v2157 = vshrl.u32 %v2156, 7
    %v2158 = vsub.s32 1, %v2157
    %v2159 = vrot.slane %v2072, %v2158
    %v2160 = vlaneseq
    %v2161 = vshrl.u32 %v2160, 7
    %v2162 = vsub.s32 2, %v2161
    %v2163 = vrot.slane %v2072, %v2162
    %v2164 = vlaneseq
    %v2165 = vshrl.u32 %v2164, 7
    %v2166 = vsub.s32 3, %v2165
    %v2167 = vrot.slane %v2072, %v2166
    %v2172 = vmul.f32 %v2147, %v2155
    %v2173 = vmul.f32 %v2148, %v2159
    %v2174 = vmul.f32 %v2149, %v2163
    %v2175 = vmul.f32 %v2150, %v2167
    %v2177 = vlaneseq
    %v2178 = vshrl.u32 %v2177, 7
    %v2179 = vsub.s32 0, %v2178
    %v2180 = vrot.slane %v2074, %v2179
    %v2181 = vlaneseq
    %v2182 = vshrl.u32 %v2181, 7
    %v2183 = vsub.s32 1, %v2182
    %v2184 = vrot.slane %v2074, %v2183
    %v2185 = vlaneseq
    %v2186 = vshrl.u32 %v2185, 7
    %v2187 = vsub.s32 2, %v2186
    %v2188 = vrot.slane %v2074, %v2187
    %v2189 = vlaneseq
    %v2190 = vshrl.u32 %v2189, 7
    %v2191 = vsub.s32 3, %v2190
    %v2192 = vrot.slane %v2074, %v2191
    %v2197 = vadd.f32 %v2172, %v2180
    %v2198 = vadd.f32 %v2173, %v2184
    %v2199 = vadd.f32 %v2174, %v2188
    %v2200 = vadd.f32 %v2175, %v2192
    %vm2201 = vcmp.ge.f32.partialorder %v2197, 0.0
    %vm2202 = vcmp.ge.f32.partialorder %v2198, 0.0
    %vm2203 = vcmp.ge.f32.partialorder %v2199, 0.0
    %vm2204 = vcmp.ge.f32.partialorder %v2200, 0.0
    %v2205 = vmul.f32 %v2197, 0.2
    %v2206 = vmul.f32 %v2198, 0.2
    %v2207 = vmul.f32 %v2199, 0.2
    %v2208 = vmul.f32 %v2200, 0.2
    %v2209 = vsel %vm2201, %v2197, %v2205
    %v2210 = vsel %vm2202, %v2198, %v2206
    %v2211 = vsel %vm2203, %v2199, %v2207
    %v2212 = vsel %vm2204, %v2200, %v2208
    %v2213 = vpack.c.bf16 %v2209, %v2209
    %v2214 = vpack.c.bf16 %v2210, %v2210
    %v2215 = vpack.c.bf16 %v2211, %v2211
    %v2216 = vpack.c.bf16 %v2212, %v2212
    %v2217 = vld [vmem:[#allocation5 + $0x20] sm:$0xf]
    %v2218 = vld [vmem:[#allocation5 + $0x44] sm:$0xf]
    %v2219 = vld [vmem:[#allocation5 + $0x68] sm:$0xf]
    %v2220 = vld [vmem:[#allocation5 + $0x8c] sm:$0xf]
    %v2221 = vld [vmem:[#allocation5 + $0xb0] sm:$0xf]
    %v2222 = vld [vmem:[#allocation5 + $0xd4] sm:$0xf]
    %v2223 = vld [vmem:[#allocation5 + $0xf8] sm:$0xf]
    %v2224 = vld [vmem:[#allocation5 + $0x11c] sm:$0xf]
    %v2225 = vld [vmem:[#allocation5 + $0x140] sm:$0xf]
    %v2226 = vld [vmem:[#allocation5 + $0x164] sm:$0xf]
    %v2227 = vld [vmem:[#allocation5 + $0x188] sm:$0xf]
    %v2228 = vld [vmem:[#allocation5 + $0x1ac] sm:$0xf]
    %v2229 = vld [vmem:[#allocation5 + $0x1d0] sm:$0xf]
    %v2230 = vld [vmem:[#allocation5 + $0x1f4] sm:$0xf]
    %v2231 = vld [vmem:[#allocation5 + $0x218] sm:$0xf]
    %v2232 = vld [vmem:[#allocation5 + $0x23c] sm:$0xf]
    %v2233 = vld [vmem:[#allocation5 + $0x260] sm:$0xf]
    %v2234 = vld [vmem:[#allocation5 + $0x284] sm:$0xf]
    %v2235 = vld [vmem:[#allocation5 + $0x2a8] sm:$0xf]
    %v2236 = vld [vmem:[#allocation5 + $0x2cc] sm:$0xf]
    %v2237 = vld [vmem:[#allocation5 + $0x2f0] sm:$0xf]
    %v2238 = vld [vmem:[#allocation5 + $0x314] sm:$0xf]
    %v2239 = vld [vmem:[#allocation5 + $0x338] sm:$0xf]
    %v2240 = vld [vmem:[#allocation5 + $0x35c] sm:$0xf]
    %v2241 = vld [vmem:[#allocation5 + $0x380] sm:$0xf]
    %v2242 = vld [vmem:[#allocation5 + $0x3a4] sm:$0xf]
    %v2243 = vld [vmem:[#allocation5 + $0x3c8] sm:$0xf]
    %v2244 = vld [vmem:[#allocation5 + $0x3ec] sm:$0xf]
    %v2245 = vld [vmem:[#allocation5 + $0x410] sm:$0xf]
    %v2246 = vld [vmem:[#allocation5 + $0x434] sm:$0xf]
    %v2247 = vld [vmem:[#allocation5 + $0x458] sm:$0xf]
    %v2248 = vld [vmem:[#allocation5 + $0x47c] sm:$0xf]
    %v2249 = vld [vmem:[#allocation5 + $0x4a0] sm:$0xf]
    %v2250 = vld [vmem:[#allocation5 + $0x4c4] sm:$0xf]
    %v2251 = vld [vmem:[#allocation5 + $0x4e8] sm:$0xf]
    %v2252 = vld [vmem:[#allocation5 + $0x50c] sm:$0xf]
    %v2253 = vld [vmem:[#allocation5 + $0x530] sm:$0xf]
    %v2254 = vld [vmem:[#allocation5 + $0x554] sm:$0xf]
    %v2255 = vld [vmem:[#allocation5 + $0x578] sm:$0xf]
    %v2256 = vld [vmem:[#allocation5 + $0x59c] sm:$0xf]
    %v2257 = vld [vmem:[#allocation5 + $0x5c0] sm:$0xf]
    %v2258 = vld [vmem:[#allocation5 + $0x5e4] sm:$0xf]
    %v2259 = vld [vmem:[#allocation5 + $0x608] sm:$0xf]
    %v2260 = vld [vmem:[#allocation5 + $0x62c] sm:$0xf]
    %v2261 = vld [vmem:[#allocation5 + $0x650] sm:$0xf]
    %v2262 = vld [vmem:[#allocation5 + $0x674] sm:$0xf]
    %v2263 = vld [vmem:[#allocation5 + $0x698] sm:$0xf]
    %v2264 = vld [vmem:[#allocation5 + $0x6bc] sm:$0xf]
    %v2265 = vld [vmem:[#allocation5 + $0x6e0] sm:$0xf]
    %v2266 = vld [vmem:[#allocation5 + $0x704] sm:$0xf]
    %v2267 = vld [vmem:[#allocation5 + $0x728] sm:$0xf]
    %v2268 = vld [vmem:[#allocation5 + $0x74c] sm:$0xf]
    %v2269 = vld [vmem:[#allocation5 + $0x770] sm:$0xf]
    %v2270 = vld [vmem:[#allocation5 + $0x794] sm:$0xf]
    %v2271 = vld [vmem:[#allocation5 + $0x7b8] sm:$0xf]
    %v2272 = vld [vmem:[#allocation5 + $0x7dc] sm:$0xf]
    %v2273 = vld [vmem:[#allocation5 + $0x800] sm:$0xf]
    %v2274 = vld [vmem:[#allocation5 + $0x824] sm:$0xf]
    %v2275 = vld [vmem:[#allocation5 + $0x848] sm:$0xf]
    %v2276 = vld [vmem:[#allocation5 + $0x86c] sm:$0xf]
    %v2277 = vld [vmem:[#allocation5 + $0x890] sm:$0xf]
    %v2278 = vld [vmem:[#allocation5 + $0x8b4] sm:$0xf]
    %v2279 = vld [vmem:[#allocation5 + $0x8d8] sm:$0xf]
    %v2280 = vld [vmem:[#allocation5 + $0x8fc] sm:$0xf]
    %v2281 = vld [vmem:[#allocation7 + $0x4] ss:$0 sm:$0xff]
    %v2346 = vunpack.c.l.b16 %v2217
    %v2347 = vunpack.c.l.b16 %v2218
    %v2348 = vunpack.c.l.b16 %v2219
    %v2349 = vunpack.c.l.b16 %v2220
    %v2350 = vunpack.c.l.b16 %v2221
    %v2351 = vunpack.c.l.b16 %v2222
    %v2352 = vunpack.c.l.b16 %v2223
    %v2353 = vunpack.c.l.b16 %v2224
    %v2354 = vunpack.c.l.b16 %v2225
    %v2355 = vunpack.c.l.b16 %v2226
    %v2356 = vunpack.c.l.b16 %v2227
    %v2357 = vunpack.c.l.b16 %v2228
    %v2358 = vunpack.c.l.b16 %v2229
    %v2359 = vunpack.c.l.b16 %v2230
    %v2360 = vunpack.c.l.b16 %v2231
    %v2361 = vunpack.c.l.b16 %v2232
    %v2362 = vunpack.c.l.b16 %v2233
    %v2363 = vunpack.c.l.b16 %v2234
    %v2364 = vunpack.c.l.b16 %v2235
    %v2365 = vunpack.c.l.b16 %v2236
    %v2366 = vunpack.c.l.b16 %v2237
    %v2367 = vunpack.c.l.b16 %v2238
    %v2368 = vunpack.c.l.b16 %v2239
    %v2369 = vunpack.c.l.b16 %v2240
    %v2370 = vunpack.c.l.b16 %v2241
    %v2371 = vunpack.c.l.b16 %v2242
    %v2372 = vunpack.c.l.b16 %v2243
    %v2373 = vunpack.c.l.b16 %v2244
    %v2374 = vunpack.c.l.b16 %v2245
    %v2375 = vunpack.c.l.b16 %v2246
    %v2376 = vunpack.c.l.b16 %v2247
    %v2377 = vunpack.c.l.b16 %v2248
    %v2378 = vunpack.c.l.b16 %v2249
    %v2379 = vunpack.c.l.b16 %v2250
    %v2380 = vunpack.c.l.b16 %v2251
    %v2381 = vunpack.c.l.b16 %v2252
    %v2382 = vunpack.c.l.b16 %v2253
    %v2383 = vunpack.c.l.b16 %v2254
    %v2384 = vunpack.c.l.b16 %v2255
    %v2385 = vunpack.c.l.b16 %v2256
    %v2386 = vunpack.c.l.b16 %v2257
    %v2387 = vunpack.c.l.b16 %v2258
    %v2388 = vunpack.c.l.b16 %v2259
    %v2389 = vunpack.c.l.b16 %v2260
    %v2390 = vunpack.c.l.b16 %v2261
    %v2391 = vunpack.c.l.b16 %v2262
    %v2392 = vunpack.c.l.b16 %v2263
    %v2393 = vunpack.c.l.b16 %v2264
    %v2394 = vunpack.c.l.b16 %v2265
    %v2395 = vunpack.c.l.b16 %v2266
    %v2396 = vunpack.c.l.b16 %v2267
    %v2397 = vunpack.c.l.b16 %v2268
    %v2398 = vunpack.c.l.b16 %v2269
    %v2399 = vunpack.c.l.b16 %v2270
    %v2400 = vunpack.c.l.b16 %v2271
    %v2401 = vunpack.c.l.b16 %v2272
    %v2402 = vunpack.c.l.b16 %v2273
    %v2403 = vunpack.c.l.b16 %v2274
    %v2404 = vunpack.c.l.b16 %v2275
    %v2405 = vunpack.c.l.b16 %v2276
    %v2406 = vunpack.c.l.b16 %v2277
    %v2407 = vunpack.c.l.b16 %v2278
    %v2408 = vunpack.c.l.b16 %v2279
    %v2409 = vunpack.c.l.b16 %v2280
    %v2410 = vpack.c.b16 %v2347, %v2346
    %v2411 = vpack.c.b16 %v2349, %v2348
    %v2412 = vpack.c.b16 %v2351, %v2350
    %v2413 = vpack.c.b16 %v2353, %v2352
    %v2414 = vpack.c.b16 %v2355, %v2354
    %v2415 = vpack.c.b16 %v2357, %v2356
    %v2416 = vpack.c.b16 %v2359, %v2358
    %v2417 = vpack.c.b16 %v2361, %v2360
    %v2418 = vpack.c.b16 %v2363, %v2362
    %v2419 = vpack.c.b16 %v2365, %v2364
    %v2420 = vpack.c.b16 %v2367, %v2366
    %v2421 = vpack.c.b16 %v2369, %v2368
    %v2422 = vpack.c.b16 %v2371, %v2370
    %v2423 = vpack.c.b16 %v2373, %v2372
    %v2424 = vpack.c.b16 %v2375, %v2374
    %v2425 = vpack.c.b16 %v2377, %v2376
    %v2426 = vpack.c.b16 %v2379, %v2378
    %v2427 = vpack.c.b16 %v2381, %v2380
    %v2428 = vpack.c.b16 %v2383, %v2382
    %v2429 = vpack.c.b16 %v2385, %v2384
    %v2430 = vpack.c.b16 %v2387, %v2386
    %v2431 = vpack.c.b16 %v2389, %v2388
    %v2432 = vpack.c.b16 %v2391, %v2390
    %v2433 = vpack.c.b16 %v2393, %v2392
    %v2434 = vpack.c.b16 %v2395, %v2394
    %v2435 = vpack.c.b16 %v2397, %v2396
    %v2436 = vpack.c.b16 %v2399, %v2398
    %v2437 = vpack.c.b16 %v2401, %v2400
    %v2438 = vpack.c.b16 %v2403, %v2402
    %v2439 = vpack.c.b16 %v2405, %v2404
    %v2440 = vpack.c.b16 %v2407, %v2406
    %v2441 = vpack.c.b16 %v2409, %v2408
    %2474 = vmatprep.subr.bf16.mxu0 0
    %2475 = vmatpush1.bf16.msra.mxu0 %v2417
    %2476 = vmatprep.subr.bf16.mxu0 0
    %2477 = vmatpush1.bf16.msra.mxu0 %v2416
    %2478 = vmatprep.subr.bf16.mxu0 0
    %2479 = vmatpush1.bf16.msra.mxu0 %v2415
    %2480 = vmatprep.subr.bf16.mxu0 0
    %2481 = vmatpush1.bf16.msra.mxu0 %v2414
    %2482 = vmatprep.subr.bf16.mxu0 0
    %2483 = vmatpush1.bf16.msra.mxu0 %v2413
    %2484 = vmatprep.subr.bf16.mxu0 0
    %2485 = vmatpush1.bf16.msra.mxu0 %v2412
    %2486 = vmatprep.subr.bf16.mxu0 0
    %2487 = vmatpush1.bf16.msra.mxu0 %v2411
    %2488 = vmatprep.subr.bf16.mxu0 0
    %2489 = vmatpush1.bf16.msra.mxu0 %v2410
    %2490 = vmatprep.subr.bf16.mxu0 0
    %2491 = vmatpush2.bf16.msra.mxu0 %v2425
    %2492 = vmatprep.subr.bf16.mxu0 0
    %2493 = vmatpush2.bf16.msra.mxu0 %v2424
    %2494 = vmatprep.subr.bf16.mxu0 0
    %2495 = vmatpush2.bf16.msra.mxu0 %v2423
    %2496 = vmatprep.subr.bf16.mxu0 0
    %2497 = vmatpush2.bf16.msra.mxu0 %v2422
    %2498 = vmatprep.subr.bf16.mxu0 0
    %2499 = vmatpush2.bf16.msra.mxu0 %v2421
    %2500 = vmatprep.subr.bf16.mxu0 0
    %2501 = vmatpush2.bf16.msra.mxu0 %v2420
    %2502 = vmatprep.subr.bf16.mxu0 0
    %2503 = vmatpush2.bf16.msra.mxu0 %v2419
    %2504 = vmatprep.subr.bf16.mxu0 0
    %2505 = vmatpush2.bf16.msra.mxu0 %v2418
    %2506 = vmatprep.mubr.bf16.mxu0 %v2214
    %2507 = vmatmul.mubr.bf16.gmra.mxu0 %v2213
    %v2508 = vpop.f32.mrf.mxu0
    %v2509 = vadd.f32 %v2281, %v2508
    %v2510 = vpop.f32.mrf.mxu0
    %v2511 = vpop.f32.mrf.mxu0
    %v2512 = vpop.f32.mrf.mxu0
    %2513 = vdwg.mxu0
    %2514 = vmatprep.subr.bf16.mxu0 0
    %2515 = vmatpush1.bf16.msra.mxu0 %v2433
    %2516 = vmatprep.subr.bf16.mxu0 0
    %2517 = vmatpush1.bf16.msra.mxu0 %v2432
    %2518 = vmatprep.subr.bf16.mxu0 0
    %2519 = vmatpush1.bf16.msra.mxu0 %v2431
    %2520 = vmatprep.subr.bf16.mxu0 0
    %2521 = vmatpush1.bf16.msra.mxu0 %v2430
    %2522 = vmatprep.subr.bf16.mxu0 0
    %2523 = vmatpush1.bf16.msra.mxu0 %v2429
    %2524 = vmatprep.subr.bf16.mxu0 0
    %2525 = vmatpush1.bf16.msra.mxu0 %v2428
    %2526 = vmatprep.subr.bf16.mxu0 0
    %2527 = vmatpush1.bf16.msra.mxu0 %v2427
    %2528 = vmatprep.subr.bf16.mxu0 0
    %2529 = vmatpush1.bf16.msra.mxu0 %v2426
    %2530 = vmatprep.subr.bf16.mxu0 0
    %2531 = vmatpush2.bf16.msra.mxu0 %v2441
    %2532 = vmatprep.subr.bf16.mxu0 0
    %2533 = vmatpush2.bf16.msra.mxu0 %v2440
    %2534 = vmatprep.subr.bf16.mxu0 0
    %2535 = vmatpush2.bf16.msra.mxu0 %v2439
    %2536 = vmatprep.subr.bf16.mxu0 0
    %2537 = vmatpush2.bf16.msra.mxu0 %v2438
    %2538 = vmatprep.subr.bf16.mxu0 0
    %2539 = vmatpush2.bf16.msra.mxu0 %v2437
    %2540 = vmatprep.subr.bf16.mxu0 0
    %2541 = vmatpush2.bf16.msra.mxu0 %v2436
    %2542 = vmatprep.subr.bf16.mxu0 0
    %2543 = vmatpush2.bf16.msra.mxu0 %v2435
    %2544 = vmatprep.subr.bf16.mxu0 0
    %2545 = vmatpush2.bf16.msra.mxu0 %v2434
    %2546 = vmatprep.mubr.bf16.mxu0 %v2216
    %2547 = vmatmul.mubr.bf16.gmra.mxu0 %v2215
    %v2548 = vpop.f32.mrf.mxu0
    %v2549 = vadd.f32 %v2509, %v2548
    %v2550 = vpop.f32.mrf.mxu0
    %v2551 = vpop.f32.mrf.mxu0
    %v2552 = vpop.f32.mrf.mxu0
    %2553 = vdwg.mxu0
    %2554 = vst [vmem:[#allocation8] sm:$0xff] %v2549
    // Predicated region
    $region26: #{tpu_custom_call.1} parent=1 // pred_check
      _
    $region27: #{tpu_custom_call.1} parent=1 // pred_check_branch
      %2556 = sbr.rel (0) target = $region29
    $region28: #{tpu_custom_call.1} parent=1 // pred_region
      %s2558 = ssub.s32 128, 128
      %2559 = vsyncadd [#allocation4], %s2558
      %s2561 = sshll.u32 [#allocation8], 4
      %s2562 = int_to_ptr.vmem [resolvable:$true] %s2561
      %2564 = dma.vmem_to_hbm [thread:$0]  %s2562, 128, %s3, [#allocation4]
    $region29: #{tpu_custom_call.1} parent=1 // pred_fallthru
      _
    // Predicated region
    $region30: #{tpu_custom_call.1} parent=1 // pred_check
      _
    $region31: #{tpu_custom_call.1} parent=1 // pred_check_branch
      %2566 = sbr.rel (0) target = $region33
    $region32: #{tpu_custom_call.1} parent=1 // pred_region
      %2567 = dma.done [#allocation4], 128
    $region33: #{tpu_custom_call.1} parent=1 // pred_fallthru
      _
    %2568 = vsyncpa [#allocation3], 1
    %2569 = vsyncpa [#allocation6], 1
    %2570 = vsyncpa [#allocation4], 1

</llo_original>
